<compile_context>
chip_gen: v5e
topology: v5e:2x2
jax: 0.10.0
libtpu: 0.0.40
codegen_flags: <defaults>
</compile_context>

<pallas_src>
import functools

import jax
import jax.numpy as jnp
from jax import lax
from jax.experimental import pallas as pl
from jax.experimental.pallas import tpu as pltpu


def sentiment_lstm_kernel(x_ref, h0_ref, c0_ref, w_ih_ref, w_hh_ref, b_ref,
                          fc_w_ref, fc_b_ref,
                          probs_ref, hn_ref, cn_ref,
                          seq_buf, xproj_buf,
                          *, n_layers, seq_len, hidden_dim):
    """Whole forward pass in one kernel invocation (everything fits VMEM; no grid)."""
    H = hidden_dim
    T = seq_len
    B = h0_ref.shape[1]                      # padded batch (sublane multiple of 8)
    mm_dtype = w_ih_ref.dtype                # bf16 weights, f32 accumulation

    # Lane mask selecting the 'g' gate columns (PyTorch order [i, f, g, o]);
    # built once, reused for every timestep of every layer.
    lane = lax.broadcasted_iota(jnp.int32, (B, 4 * H), 1)
    g_mask = (lane >= 2 * H) & (lane < 3 * H)

    h = h0_ref[0]
    for layer in range(n_layers):
        # Layer input: x for layer 0, previous layer's outputs (VMEM scratch) after.
        inp = x_ref[...] if layer == 0 else seq_buf[...]            # (T*B, H) f32

        # Hoisted input projection: all T timesteps in a single MXU matmul,
        # bias broadcast folded in once per layer. Parked in VMEM scratch so the
        # time loop only does cheap sublane-aligned ref slices.
        xproj_buf[...] = (jnp.dot(inp.astype(mm_dtype), w_ih_ref[layer],
                                  preferred_element_type=jnp.float32)
                          + b_ref[layer])                           # (T*B, 4H) f32

        w_hh = w_hh_ref[layer]                                      # (H, 4H) bf16

        def step(t, carry):
            h, c = carry
            row = pl.multiple_of(t * B, B)                          # aligned slice start
            # Only the recurrent matmul stays on the serial per-step path.
            gates = xproj_buf[pl.ds(row, B), :] + jnp.dot(
                h.astype(mm_dtype), w_hh, preferred_element_type=jnp.float32)
            # Two full-width EUP pushes + one VPU select instead of four narrow
            # 32-lane activations.
            act = jnp.where(g_mask, jnp.tanh(gates), jax.nn.sigmoid(gates))
            i_g = act[:, 0 * H:1 * H]
            f_g = act[:, 1 * H:2 * H]
            g_g = act[:, 2 * H:3 * H]
            o_g = act[:, 3 * H:4 * H]
            c = f_g * c + i_g * g_g
            h = o_g * jnp.tanh(c)
            # Park the layer output in VMEM scratch (feeds the next layer's
            # hoisted projection and bounds vreg live ranges).
            seq_buf[pl.ds(row, B), :] = h
            return h, c

        h, c = lax.fori_loop(0, T, step, (h0_ref[layer], c0_ref[layer]),
                             unroll=True)

        hn_ref[layer] = h
        cn_ref[layer] = c
        # TODO(synk): PyTorch applies inter-layer dropout (p=drop_prob) only in
        # training mode; eval-mode semantics (no dropout) are implemented here.

    # out[:, -1, :] of the top layer == h after the final timestep.
    logits = (jnp.dot(h.astype(mm_dtype), fc_w_ref[...],
                      preferred_element_type=jnp.float32)
              + fc_b_ref[...])                                      # (B, O_pad)
    # Padded lanes carry a -1e30 bias -> exp == 0 -> softmax over real lanes only.
    m = jnp.max(logits, axis=1, keepdims=True)
    e = jnp.exp(logits - m)
    probs_ref[...] = e / jnp.sum(e, axis=1, keepdims=True)          # softmax(dim=1)


def sentiment_lstm_forward(x, hidden, params, *, n_layers, hidden_dim, output_size):
    h0, c0 = hidden
    w_ih, w_hh, b, fc_w, fc_b = params
    B, T, E = x.shape
    H = hidden_dim
    assert E == H, "stacked-weight layout assumes embedding_dim == hidden_dim"

    B_pad = ((B + 7) // 8) * 8          # sublane multiple for clean (8,128) tiles
    O_pad = 128                          # lane-dense output slab

    # (B, T, H) -> pad batch -> time-major -> flat (T*B_pad, H); leading-axis
    # time slices and a free reshape for the hoisted input projection.
    x_p = jnp.zeros((B_pad, T, H), jnp.float32).at[:B].set(x.astype(jnp.float32))
    x_p = jnp.transpose(x_p, (1, 0, 2)).reshape(T * B_pad, H)
    h0_p = jnp.zeros((n_layers, B_pad, H), jnp.float32).at[:, :B].set(h0)
    c0_p = jnp.zeros((n_layers, B_pad, H), jnp.float32).at[:, :B].set(c0)

    # bf16 weights (halves weight bytes / VMEM; MXU accumulates in f32).
    w_ih_b = w_ih.astype(jnp.bfloat16)
    w_hh_b = w_hh.astype(jnp.bfloat16)
    b_r = b.reshape(n_layers, 1, 4 * H).astype(jnp.float32)         # 2D broadcast per layer
    fc_w_p = jnp.zeros((H, O_pad), jnp.bfloat16).at[:, :output_size].set(
        fc_w.astype(jnp.bfloat16))
    fc_b_p = jnp.full((1, O_pad), -1e30, jnp.float32).at[:, :output_size].set(fc_b)

    kernel = functools.partial(
        sentiment_lstm_kernel, n_layers=n_layers, seq_len=T, hidden_dim=H)

    vmem = lambda: pl.BlockSpec(memory_space=pltpu.MemorySpace.VMEM)
    probs_pad, h_n, c_n = pl.pallas_call(
        kernel,
        out_shape=(
            jax.ShapeDtypeStruct((B_pad, O_pad), jnp.float32),
            jax.ShapeDtypeStruct((n_layers, B_pad, H), jnp.float32),
            jax.ShapeDtypeStruct((n_layers, B_pad, H), jnp.float32),
        ),
        in_specs=[vmem() for _ in range(8)],
        out_specs=(vmem(), vmem(), vmem()),
        scratch_shapes=[
            pltpu.VMEM((T * B_pad, H), jnp.float32),        # seq_buf
            pltpu.VMEM((T * B_pad, 4 * H), jnp.float32),    # xproj_buf
        ],
    )(x_p, h0_p, c0_p, w_ih_b, w_hh_b, b_r, fc_w_p, fc_b_p)

    probs = probs_pad[:B, :output_size]
    return probs, (h_n[:, :B, :], c_n[:, :B, :])


def reference_forward(x, hidden, params, *, n_layers, hidden_dim, output_size):
    """Pure-JAX reference (same bf16 weight cast / f32 accumulation as the kernel)."""
    h0, c0 = hidden
    w_ih, w_hh, b, fc_w, fc_b = params
    H = hidden_dim
    w_ih_b = w_ih.astype(jnp.bfloat16)
    w_hh_b = w_hh.astype(jnp.bfloat16)
    fc_w_b = fc_w.astype(jnp.bfloat16)

    seq = x.astype(jnp.float32)                              # (B, T, H)
    hn, cn = [], []
    for l in range(n_layers):
        h, c = h0[l], c0[l]
        outs = []
        for t in range(seq.shape[1]):
            xt = seq[:, t, :]
            gates = (jnp.dot(xt.astype(jnp.bfloat16), w_ih_b[l],
                             preferred_element_type=jnp.float32)
                     + jnp.dot(h.astype(jnp.bfloat16), w_hh_b[l],
                               preferred_element_type=jnp.float32)
                     + b[l])
            i_g = jax.nn.sigmoid(gates[:, 0 * H:1 * H])
            f_g = jax.nn.sigmoid(gates[:, 1 * H:2 * H])
            g_g = jnp.tanh(gates[:, 2 * H:3 * H])
            o_g = jax.nn.sigmoid(gates[:, 3 * H:4 * H])
            c = f_g * c + i_g * g_g
            h = o_g * jnp.tanh(c)
            outs.append(h)
        seq = jnp.stack(outs, axis=1)
        hn.append(h)
        cn.append(c)
    logits = jnp.dot(h.astype(jnp.bfloat16), fc_w_b,
                     preferred_element_type=jnp.float32) + fc_b[0]
    probs = jax.nn.softmax(logits, axis=1)
    return probs, (jnp.stack(hn), jnp.stack(cn))


def init_params(key, *, n_layers, embedding_dim, hidden_dim, output_size):
    """Deterministic parameter init (PyTorch-style U(-1/sqrt(H), 1/sqrt(H)))."""
    assert embedding_dim == hidden_dim, "stacked-weight layout assumes E == H"
    H, O, L = hidden_dim, output_size, n_layers
    k = 1.0 / jnp.sqrt(jnp.float32(H))
    ks = jax.random.split(key, 6)
    # Already transposed: (L, in_dim, 4H) and (L, H, 4H); gate order [i, f, g, o].
    w_ih = jax.random.uniform(ks[0], (L, H, 4 * H), jnp.float32, -k, k)
    w_hh = jax.random.uniform(ks[1], (L, H, 4 * H), jnp.float32, -k, k)
    b_ih = jax.random.uniform(ks[2], (L, 4 * H), jnp.float32, -k, k)
    b_hh = jax.random.uniform(ks[3], (L, 4 * H), jnp.float32, -k, k)
    b = b_ih + b_hh
    fc_w = jax.random.uniform(ks[4], (H, O), jnp.float32, -k, k)   # == nn.Linear.weight.T
    fc_b = jax.random.uniform(ks[5], (1, O), jnp.float32, -k, k)
    return w_ih, w_hh, b, fc_w, fc_b


if __name__ == "__main__":
    # Small shapes consistent with the module's forward.
    batch, seq, embedding_dim, hidden_dim = 2, 8, 32, 32
    n_layers, output_size = 2, 4

    key = jax.random.PRNGKey(0)
    k_x, k_p = jax.random.split(key)

    x = jax.random.normal(k_x, (batch, seq, embedding_dim), jnp.float32)
    # init_hidden(): zeros of shape (n_layers, batch, hidden_dim)
    h0 = jnp.zeros((n_layers, batch, hidden_dim), jnp.float32)
    c0 = jnp.zeros((n_layers, batch, hidden_dim), jnp.float32)

    params = init_params(k_p, n_layers=n_layers, embedding_dim=embedding_dim,
                         hidden_dim=hidden_dim, output_size=output_size)

    probs, (h_n, c_n) = sentiment_lstm_forward(
        x, (h0, c0), params,
        n_layers=n_layers, hidden_dim=hidden_dim, output_size=output_size)
    jax.block_until_ready((probs, h_n, c_n))

    # Shape / sanity checks.
    assert probs.shape == (batch, output_size)
    assert h_n.shape == (n_layers, batch, hidden_dim)
    assert c_n.shape == (n_layers, batch, hidden_dim)
    assert bool(jnp.all(jnp.isfinite(probs)))
    assert bool(jnp.allclose(jnp.sum(probs, axis=1), 1.0, atol=1e-5))

    # Numerical check against a pure-JAX reference (same bf16 weight precision).
    probs_ref, (h_ref, c_ref) = reference_forward(
        x, (h0, c0), params,
        n_layers=n_layers, hidden_dim=hidden_dim, output_size=output_size)
    jax.block_until_ready((probs_ref, h_ref, c_ref))
    assert bool(jnp.allclose(probs, probs_ref, atol=1e-2, rtol=1e-2))
    assert bool(jnp.allclose(h_n, h_ref, atol=1e-2, rtol=1e-2))
    assert bool(jnp.allclose(c_n, c_ref, atol=1e-2, rtol=1e-2))

    print("KERNEL_OK")
</pallas_src>

<mosaic_0001>
module attributes {stable_mosaic.version = 11 : i64} {
  func.func @sentiment_lstm_kernel(%arg0: memref<64x32xf32, #tpu.memory_space<vmem>>, %arg1: memref<2x8x32xf32, #tpu.memory_space<vmem>>, %arg2: memref<2x8x32xf32, #tpu.memory_space<vmem>>, %arg3: memref<2x32x128xbf16, #tpu.memory_space<vmem>>, %arg4: memref<2x32x128xbf16, #tpu.memory_space<vmem>>, %arg5: memref<2x1x128xf32, #tpu.memory_space<vmem>>, %arg6: memref<32x128xbf16, #tpu.memory_space<vmem>>, %arg7: memref<1x128xf32, #tpu.memory_space<vmem>>, %arg8: memref<8x128xf32, #tpu.memory_space<vmem>>, %arg9: memref<2x8x32xf32, #tpu.memory_space<vmem>>, %arg10: memref<2x8x32xf32, #tpu.memory_space<vmem>>, %arg11: memref<64x32xf32, #tpu.memory_space<vmem>>, %arg12: memref<64x128xf32, #tpu.memory_space<vmem>>) attributes {dimension_semantics = [], scalar_prefetch = 0 : i64, scratch_operands = 2 : i64, tpu.core_type = #tpu.core_type<tc>} {
    %0 = tpu.iota {dimensions = array<i32: 1>} : vector<8x128xi32>
    %c64_i32 = arith.constant 64 : i32
    %1 = vector.broadcast %c64_i32 : i32 to vector<8x128xi32>
    %2 = arith.cmpi sge, %0, %1 : vector<8x128xi32>
    %c96_i32 = arith.constant 96 : i32
    %3 = vector.broadcast %c96_i32 : i32 to vector<8x128xi32>
    %4 = arith.cmpi slt, %0, %3 : vector<8x128xi32>
    %5 = arith.andi %2, %4 : vector<8x128xi1>
    %c0 = arith.constant 0 : index
    %c0_0 = arith.constant 0 : index
    %6 = vector.load %arg0[%c0, %c0_0] : memref<64x32xf32, #tpu.memory_space<vmem>>, vector<64x32xf32>
    %7 = arith.truncf %6 : vector<64x32xf32> to vector<64x32xbf16>
    %c0_1 = arith.constant 0 : index
    %c0_2 = arith.constant 0 : index
    %c0_3 = arith.constant 0 : index
    %8 = vector.load %arg3[%c0_1, %c0_2, %c0_3] : memref<2x32x128xbf16, #tpu.memory_space<vmem>>, vector<1x32x128xbf16>
    %9 = vector.shape_cast %8 : vector<1x32x128xbf16> to vector<32x128xbf16>
    %cst = arith.constant dense<0.000000e+00> : vector<64x128xf32>
    %10 = tpu.matmul %7, %9, %cst {dimension_numbers = #tpu.dot_dimension_numbers<[1], [0], [0], [1], [0, 0, 1, 1], [], []>} : vector<64x32xbf16>, vector<32x128xbf16>, vector<64x128xf32> -> vector<64x128xf32>
    %c0_4 = arith.constant 0 : index
    %c0_5 = arith.constant 0 : index
    %c0_6 = arith.constant 0 : index
    %11 = vector.load %arg5[%c0_4, %c0_5, %c0_6] : memref<2x1x128xf32, #tpu.memory_space<vmem>>, vector<1x1x128xf32>
    %12 = vector.shape_cast %11 : vector<1x1x128xf32> to vector<1x128xf32>
    %13 = vector.broadcast %12 : vector<1x128xf32> to vector<64x128xf32>
    %14 = arith.addf %10, %13 : vector<64x128xf32>
    %c0_7 = arith.constant 0 : index
    %c0_8 = arith.constant 0 : index
    %15 = vector.load %arg12[%c0_7, %c0_8] : memref<64x128xf32, #tpu.memory_space<vmem>>, vector<64x128xf32>
    tpu.vector_store %arg12[%c0_7, %c0_8], %14 {strides = array<i32>} : memref<64x128xf32, #tpu.memory_space<vmem>>, vector<64x128xf32>,
    %c0_9 = arith.constant 0 : index
    %c0_10 = arith.constant 0 : index
    %c0_11 = arith.constant 0 : index
    %16 = vector.load %arg4[%c0_9, %c0_10, %c0_11] : memref<2x32x128xbf16, #tpu.memory_space<vmem>>, vector<1x32x128xbf16>
    %17 = vector.shape_cast %16 : vector<1x32x128xbf16> to vector<32x128xbf16>
    %c0_12 = arith.constant 0 : index
    %c0_13 = arith.constant 0 : index
    %c0_14 = arith.constant 0 : index
    %18 = vector.load %arg1[%c0_12, %c0_13, %c0_14] : memref<2x8x32xf32, #tpu.memory_space<vmem>>, vector<1x8x32xf32>
    %19 = vector.shape_cast %18 : vector<1x8x32xf32> to vector<8x32xf32>
    %c0_15 = arith.constant 0 : index
    %c0_16 = arith.constant 0 : index
    %c0_17 = arith.constant 0 : index
    %20 = vector.load %arg2[%c0_15, %c0_16, %c0_17] : memref<2x8x32xf32, #tpu.memory_space<vmem>>, vector<1x8x32xf32>
    %21 = vector.shape_cast %20 : vector<1x8x32xf32> to vector<8x32xf32>
    %c0_i32 = arith.constant 0 : i32
    %c8_i32 = arith.constant 8 : i32
    %22 = arith.muli %c0_i32, %c8_i32 : i32
    %23 = tpu.assume_multiple %22, 8 : i32
    %24 = arith.index_cast %23 : i32 to index
    %c0_18 = arith.constant 0 : index
    %25 = vector.load %arg12[%24, %c0_18] : memref<64x128xf32, #tpu.memory_space<vmem>>, vector<8x128xf32>
    %26 = arith.truncf %19 : vector<8x32xf32> to vector<8x32xbf16>
    %cst_19 = arith.constant dense<0.000000e+00> : vector<8x128xf32>
    %27 = tpu.matmul %26, %17, %cst_19 {dimension_numbers = #tpu.dot_dimension_numbers<[1], [0], [0], [1], [0, 0, 1, 1], [], []>} : vector<8x32xbf16>, vector<32x128xbf16>, vector<8x128xf32> -> vector<8x128xf32>
    %28 = arith.addf %25, %27 : vector<8x128xf32>
    %29 = math.tanh %28 : vector<8x128xf32>
    %30 = arith.negf %28 : vector<8x128xf32>
    %31 = math.exp %30 : vector<8x128xf32>
    %cst_20 = arith.constant 1.000000e+00 : f32
    %32 = vector.broadcast %cst_20 : f32 to vector<8x128xf32>
    %33 = arith.addf %32, %31 : vector<8x128xf32>
    %34 = arith.divf %32, %33 : vector<8x128xf32>
    %35 = arith.select %5, %29, %34 : vector<8x128xi1>, vector<8x128xf32>
    %36 = vector.extract_strided_slice %35 {offsets = [0, 0], sizes = [8, 32], strides = [1, 1]} : vector<8x128xf32> to vector<8x32xf32>
    %37 = vector.extract_strided_slice %35 {offsets = [0, 32], sizes = [8, 32], strides = [1, 1]} : vector<8x128xf32> to vector<8x32xf32>
    %38 = vector.extract_strided_slice %35 {offsets = [0, 64], sizes = [8, 32], strides = [1, 1]} : vector<8x128xf32> to vector<8x32xf32>
    %39 = vector.extract_strided_slice %35 {offsets = [0, 96], sizes = [8, 32], strides = [1, 1]} : vector<8x128xf32> to vector<8x32xf32>
    %40 = arith.mulf %37, %21 : vector<8x32xf32>
    %41 = arith.mulf %36, %38 : vector<8x32xf32>
    %42 = arith.addf %40, %41 : vector<8x32xf32>
    %43 = math.tanh %42 : vector<8x32xf32>
    %44 = arith.mulf %39, %43 : vector<8x32xf32>
    %45 = arith.index_cast %23 : i32 to index
    %c0_21 = arith.constant 0 : index
    %46 = vector.load %arg11[%45, %c0_21] : memref<64x32xf32, #tpu.memory_space<vmem>>, vector<8x32xf32>
    tpu.vector_store %arg11[%45, %c0_21], %44 {strides = array<i32>} : memref<64x32xf32, #tpu.memory_space<vmem>>, vector<8x32xf32>,
    %c1_i32 = arith.constant 1 : i32
    %c8_i32_22 = arith.constant 8 : i32
    %47 = arith.muli %c1_i32, %c8_i32_22 : i32
    %48 = tpu.assume_multiple %47, 8 : i32
    %49 = arith.index_cast %48 : i32 to index
    %c0_23 = arith.constant 0 : index
    %50 = vector.load %arg12[%49, %c0_23] : memref<64x128xf32, #tpu.memory_space<vmem>>, vector<8x128xf32>
    %51 = arith.truncf %44 : vector<8x32xf32> to vector<8x32xbf16>
    %cst_24 = arith.constant dense<0.000000e+00> : vector<8x128xf32>
    %52 = tpu.matmul %51, %17, %cst_24 {dimension_numbers = #tpu.dot_dimension_numbers<[1], [0], [0], [1], [0, 0, 1, 1], [], []>} : vector<8x32xbf16>, vector<32x128xbf16>, vector<8x128xf32> -> vector<8x128xf32>
    %53 = arith.addf %50, %52 : vector<8x128xf32>
    %54 = math.tanh %53 : vector<8x128xf32>
    %55 = arith.negf %53 : vector<8x128xf32>
    %56 = math.exp %55 : vector<8x128xf32>
    %cst_25 = arith.constant 1.000000e+00 : f32
    %57 = vector.broadcast %cst_25 : f32 to vector<8x128xf32>
    %58 = arith.addf %57, %56 : vector<8x128xf32>
    %59 = arith.divf %57, %58 : vector<8x128xf32>
    %60 = arith.select %5, %54, %59 : vector<8x128xi1>, vector<8x128xf32>
    %61 = vector.extract_strided_slice %60 {offsets = [0, 0], sizes = [8, 32], strides = [1, 1]} : vector<8x128xf32> to vector<8x32xf32>
    %62 = vector.extract_strided_slice %60 {offsets = [0, 32], sizes = [8, 32], strides = [1, 1]} : vector<8x128xf32> to vector<8x32xf32>
    %63 = vector.extract_strided_slice %60 {offsets = [0, 64], sizes = [8, 32], strides = [1, 1]} : vector<8x128xf32> to vector<8x32xf32>
    %64 = vector.extract_strided_slice %60 {offsets = [0, 96], sizes = [8, 32], strides = [1, 1]} : vector<8x128xf32> to vector<8x32xf32>
    %65 = arith.mulf %62, %42 : vector<8x32xf32>
    %66 = arith.mulf %61, %63 : vector<8x32xf32>
    %67 = arith.addf %65, %66 : vector<8x32xf32>
    %68 = math.tanh %67 : vector<8x32xf32>
    %69 = arith.mulf %64, %68 : vector<8x32xf32>
    %70 = arith.index_cast %48 : i32 to index
    %c0_26 = arith.constant 0 : index
    %71 = vector.load %arg11[%70, %c0_26] : memref<64x32xf32, #tpu.memory_space<vmem>>, vector<8x32xf32>
    tpu.vector_store %arg11[%70, %c0_26], %69 {strides = array<i32>} : memref<64x32xf32, #tpu.memory_space<vmem>>, vector<8x32xf32>,
    %c2_i32 = arith.constant 2 : i32
    %c8_i32_27 = arith.constant 8 : i32
    %72 = arith.muli %c2_i32, %c8_i32_27 : i32
    %73 = tpu.assume_multiple %72, 8 : i32
    %74 = arith.index_cast %73 : i32 to index
    %c0_28 = arith.constant 0 : index
    %75 = vector.load %arg12[%74, %c0_28] : memref<64x128xf32, #tpu.memory_space<vmem>>, vector<8x128xf32>
    %76 = arith.truncf %69 : vector<8x32xf32> to vector<8x32xbf16>
    %cst_29 = arith.constant dense<0.000000e+00> : vector<8x128xf32>
    %77 = tpu.matmul %76, %17, %cst_29 {dimension_numbers = #tpu.dot_dimension_numbers<[1], [0], [0], [1], [0, 0, 1, 1], [], []>} : vector<8x32xbf16>, vector<32x128xbf16>, vector<8x128xf32> -> vector<8x128xf32>
    %78 = arith.addf %75, %77 : vector<8x128xf32>
    %79 = math.tanh %78 : vector<8x128xf32>
    %80 = arith.negf %78 : vector<8x128xf32>
    %81 = math.exp %80 : vector<8x128xf32>
    %cst_30 = arith.constant 1.000000e+00 : f32
    %82 = vector.broadcast %cst_30 : f32 to vector<8x128xf32>
    %83 = arith.addf %82, %81 : vector<8x128xf32>
    %84 = arith.divf %82, %83 : vector<8x128xf32>
    %85 = arith.select %5, %79, %84 : vector<8x128xi1>, vector<8x128xf32>
    %86 = vector.extract_strided_slice %85 {offsets = [0, 0], sizes = [8, 32], strides = [1, 1]} : vector<8x128xf32> to vector<8x32xf32>
    %87 = vector.extract_strided_slice %85 {offsets = [0, 32], sizes = [8, 32], strides = [1, 1]} : vector<8x128xf32> to vector<8x32xf32>
    %88 = vector.extract_strided_slice %85 {offsets = [0, 64], sizes = [8, 32], strides = [1, 1]} : vector<8x128xf32> to vector<8x32xf32>
    %89 = vector.extract_strided_slice %85 {offsets = [0, 96], sizes = [8, 32], strides = [1, 1]} : vector<8x128xf32> to vector<8x32xf32>
    %90 = arith.mulf %87, %67 : vector<8x32xf32>
    %91 = arith.mulf %86, %88 : vector<8x32xf32>
    %92 = arith.addf %90, %91 : vector<8x32xf32>
    %93 = math.tanh %92 : vector<8x32xf32>
    %94 = arith.mulf %89, %93 : vector<8x32xf32>
    %95 = arith.index_cast %73 : i32 to index
    %c0_31 = arith.constant 0 : index
    %96 = vector.load %arg11[%95, %c0_31] : memref<64x32xf32, #tpu.memory_space<vmem>>, vector<8x32xf32>
    tpu.vector_store %arg11[%95, %c0_31], %94 {strides = array<i32>} : memref<64x32xf32, #tpu.memory_space<vmem>>, vector<8x32xf32>,
    %c3_i32 = arith.constant 3 : i32
    %c8_i32_32 = arith.constant 8 : i32
    %97 = arith.muli %c3_i32, %c8_i32_32 : i32
    %98 = tpu.assume_multiple %97, 8 : i32
    %99 = arith.index_cast %98 : i32 to index
    %c0_33 = arith.constant 0 : index
    %100 = vector.load %arg12[%99, %c0_33] : memref<64x128xf32, #tpu.memory_space<vmem>>, vector<8x128xf32>
    %101 = arith.truncf %94 : vector<8x32xf32> to vector<8x32xbf16>
    %cst_34 = arith.constant dense<0.000000e+00> : vector<8x128xf32>
    %102 = tpu.matmul %101, %17, %cst_34 {dimension_numbers = #tpu.dot_dimension_numbers<[1], [0], [0], [1], [0, 0, 1, 1], [], []>} : vector<8x32xbf16>, vector<32x128xbf16>, vector<8x128xf32> -> vector<8x128xf32>
    %103 = arith.addf %100, %102 : vector<8x128xf32>
    %104 = math.tanh %103 : vector<8x128xf32>
    %105 = arith.negf %103 : vector<8x128xf32>
    %106 = math.exp %105 : vector<8x128xf32>
    %cst_35 = arith.constant 1.000000e+00 : f32
    %107 = vector.broadcast %cst_35 : f32 to vector<8x128xf32>
    %108 = arith.addf %107, %106 : vector<8x128xf32>
    %109 = arith.divf %107, %108 : vector<8x128xf32>
    %110 = arith.select %5, %104, %109 : vector<8x128xi1>, vector<8x128xf32>
    %111 = vector.extract_strided_slice %110 {offsets = [0, 0], sizes = [8, 32], strides = [1, 1]} : vector<8x128xf32> to vector<8x32xf32>
    %112 = vector.extract_strided_slice %110 {offsets = [0, 32], sizes = [8, 32], strides = [1, 1]} : vector<8x128xf32> to vector<8x32xf32>
    %113 = vector.extract_strided_slice %110 {offsets = [0, 64], sizes = [8, 32], strides = [1, 1]} : vector<8x128xf32> to vector<8x32xf32>
    %114 = vector.extract_strided_slice %110 {offsets = [0, 96], sizes = [8, 32], strides = [1, 1]} : vector<8x128xf32> to vector<8x32xf32>
    %115 = arith.mulf %112, %92 : vector<8x32xf32>
    %116 = arith.mulf %111, %113 : vector<8x32xf32>
    %117 = arith.addf %115, %116 : vector<8x32xf32>
    %118 = math.tanh %117 : vector<8x32xf32>
    %119 = arith.mulf %114, %118 : vector<8x32xf32>
    %120 = arith.index_cast %98 : i32 to index
    %c0_36 = arith.constant 0 : index
    %121 = vector.load %arg11[%120, %c0_36] : memref<64x32xf32, #tpu.memory_space<vmem>>, vector<8x32xf32>
    tpu.vector_store %arg11[%120, %c0_36], %119 {strides = array<i32>} : memref<64x32xf32, #tpu.memory_space<vmem>>, vector<8x32xf32>,
    %c4_i32 = arith.constant 4 : i32
    %c8_i32_37 = arith.constant 8 : i32
    %122 = arith.muli %c4_i32, %c8_i32_37 : i32
    %123 = tpu.assume_multiple %122, 8 : i32
    %124 = arith.index_cast %123 : i32 to index
    %c0_38 = arith.constant 0 : index
    %125 = vector.load %arg12[%124, %c0_38] : memref<64x128xf32, #tpu.memory_space<vmem>>, vector<8x128xf32>
    %126 = arith.truncf %119 : vector<8x32xf32> to vector<8x32xbf16>
    %cst_39 = arith.constant dense<0.000000e+00> : vector<8x128xf32>
    %127 = tpu.matmul %126, %17, %cst_39 {dimension_numbers = #tpu.dot_dimension_numbers<[1], [0], [0], [1], [0, 0, 1, 1], [], []>} : vector<8x32xbf16>, vector<32x128xbf16>, vector<8x128xf32> -> vector<8x128xf32>
    %128 = arith.addf %125, %127 : vector<8x128xf32>
    %129 = math.tanh %128 : vector<8x128xf32>
    %130 = arith.negf %128 : vector<8x128xf32>
    %131 = math.exp %130 : vector<8x128xf32>
    %cst_40 = arith.constant 1.000000e+00 : f32
    %132 = vector.broadcast %cst_40 : f32 to vector<8x128xf32>
    %133 = arith.addf %132, %131 : vector<8x128xf32>
    %134 = arith.divf %132, %133 : vector<8x128xf32>
    %135 = arith.select %5, %129, %134 : vector<8x128xi1>, vector<8x128xf32>
    %136 = vector.extract_strided_slice %135 {offsets = [0, 0], sizes = [8, 32], strides = [1, 1]} : vector<8x128xf32> to vector<8x32xf32>
    %137 = vector.extract_strided_slice %135 {offsets = [0, 32], sizes = [8, 32], strides = [1, 1]} : vector<8x128xf32> to vector<8x32xf32>
    %138 = vector.extract_strided_slice %135 {offsets = [0, 64], sizes = [8, 32], strides = [1, 1]} : vector<8x128xf32> to vector<8x32xf32>
    %139 = vector.extract_strided_slice %135 {offsets = [0, 96], sizes = [8, 32], strides = [1, 1]} : vector<8x128xf32> to vector<8x32xf32>
    %140 = arith.mulf %137, %117 : vector<8x32xf32>
    %141 = arith.mulf %136, %138 : vector<8x32xf32>
    %142 = arith.addf %140, %141 : vector<8x32xf32>
    %143 = math.tanh %142 : vector<8x32xf32>
    %144 = arith.mulf %139, %143 : vector<8x32xf32>
    %145 = arith.index_cast %123 : i32 to index
    %c0_41 = arith.constant 0 : index
    %146 = vector.load %arg11[%145, %c0_41] : memref<64x32xf32, #tpu.memory_space<vmem>>, vector<8x32xf32>
    tpu.vector_store %arg11[%145, %c0_41], %144 {strides = array<i32>} : memref<64x32xf32, #tpu.memory_space<vmem>>, vector<8x32xf32>,
    %c5_i32 = arith.constant 5 : i32
    %c8_i32_42 = arith.constant 8 : i32
    %147 = arith.muli %c5_i32, %c8_i32_42 : i32
    %148 = tpu.assume_multiple %147, 8 : i32
    %149 = arith.index_cast %148 : i32 to index
    %c0_43 = arith.constant 0 : index
    %150 = vector.load %arg12[%149, %c0_43] : memref<64x128xf32, #tpu.memory_space<vmem>>, vector<8x128xf32>
    %151 = arith.truncf %144 : vector<8x32xf32> to vector<8x32xbf16>
    %cst_44 = arith.constant dense<0.000000e+00> : vector<8x128xf32>
    %152 = tpu.matmul %151, %17, %cst_44 {dimension_numbers = #tpu.dot_dimension_numbers<[1], [0], [0], [1], [0, 0, 1, 1], [], []>} : vector<8x32xbf16>, vector<32x128xbf16>, vector<8x128xf32> -> vector<8x128xf32>
    %153 = arith.addf %150, %152 : vector<8x128xf32>
    %154 = math.tanh %153 : vector<8x128xf32>
    %155 = arith.negf %153 : vector<8x128xf32>
    %156 = math.exp %155 : vector<8x128xf32>
    %cst_45 = arith.constant 1.000000e+00 : f32
    %157 = vector.broadcast %cst_45 : f32 to vector<8x128xf32>
    %158 = arith.addf %157, %156 : vector<8x128xf32>
    %159 = arith.divf %157, %158 : vector<8x128xf32>
    %160 = arith.select %5, %154, %159 : vector<8x128xi1>, vector<8x128xf32>
    %161 = vector.extract_strided_slice %160 {offsets = [0, 0], sizes = [8, 32], strides = [1, 1]} : vector<8x128xf32> to vector<8x32xf32>
    %162 = vector.extract_strided_slice %160 {offsets = [0, 32], sizes = [8, 32], strides = [1, 1]} : vector<8x128xf32> to vector<8x32xf32>
    %163 = vector.extract_strided_slice %160 {offsets = [0, 64], sizes = [8, 32], strides = [1, 1]} : vector<8x128xf32> to vector<8x32xf32>
    %164 = vector.extract_strided_slice %160 {offsets = [0, 96], sizes = [8, 32], strides = [1, 1]} : vector<8x128xf32> to vector<8x32xf32>
    %165 = arith.mulf %162, %142 : vector<8x32xf32>
    %166 = arith.mulf %161, %163 : vector<8x32xf32>
    %167 = arith.addf %165, %166 : vector<8x32xf32>
    %168 = math.tanh %167 : vector<8x32xf32>
    %169 = arith.mulf %164, %168 : vector<8x32xf32>
    %170 = arith.index_cast %148 : i32 to index
    %c0_46 = arith.constant 0 : index
    %171 = vector.load %arg11[%170, %c0_46] : memref<64x32xf32, #tpu.memory_space<vmem>>, vector<8x32xf32>
    tpu.vector_store %arg11[%170, %c0_46], %169 {strides = array<i32>} : memref<64x32xf32, #tpu.memory_space<vmem>>, vector<8x32xf32>,
    %c6_i32 = arith.constant 6 : i32
    %c8_i32_47 = arith.constant 8 : i32
    %172 = arith.muli %c6_i32, %c8_i32_47 : i32
    %173 = tpu.assume_multiple %172, 8 : i32
    %174 = arith.index_cast %173 : i32 to index
    %c0_48 = arith.constant 0 : index
    %175 = vector.load %arg12[%174, %c0_48] : memref<64x128xf32, #tpu.memory_space<vmem>>, vector<8x128xf32>
    %176 = arith.truncf %169 : vector<8x32xf32> to vector<8x32xbf16>
    %cst_49 = arith.constant dense<0.000000e+00> : vector<8x128xf32>
    %177 = tpu.matmul %176, %17, %cst_49 {dimension_numbers = #tpu.dot_dimension_numbers<[1], [0], [0], [1], [0, 0, 1, 1], [], []>} : vector<8x32xbf16>, vector<32x128xbf16>, vector<8x128xf32> -> vector<8x128xf32>
    %178 = arith.addf %175, %177 : vector<8x128xf32>
    %179 = math.tanh %178 : vector<8x128xf32>
    %180 = arith.negf %178 : vector<8x128xf32>
    %181 = math.exp %180 : vector<8x128xf32>
    %cst_50 = arith.constant 1.000000e+00 : f32
    %182 = vector.broadcast %cst_50 : f32 to vector<8x128xf32>
    %183 = arith.addf %182, %181 : vector<8x128xf32>
    %184 = arith.divf %182, %183 : vector<8x128xf32>
    %185 = arith.select %5, %179, %184 : vector<8x128xi1>, vector<8x128xf32>
    %186 = vector.extract_strided_slice %185 {offsets = [0, 0], sizes = [8, 32], strides = [1, 1]} : vector<8x128xf32> to vector<8x32xf32>
    %187 = vector.extract_strided_slice %185 {offsets = [0, 32], sizes = [8, 32], strides = [1, 1]} : vector<8x128xf32> to vector<8x32xf32>
    %188 = vector.extract_strided_slice %185 {offsets = [0, 64], sizes = [8, 32], strides = [1, 1]} : vector<8x128xf32> to vector<8x32xf32>
    %189 = vector.extract_strided_slice %185 {offsets = [0, 96], sizes = [8, 32], strides = [1, 1]} : vector<8x128xf32> to vector<8x32xf32>
    %190 = arith.mulf %187, %167 : vector<8x32xf32>
    %191 = arith.mulf %186, %188 : vector<8x32xf32>
    %192 = arith.addf %190, %191 : vector<8x32xf32>
    %193 = math.tanh %192 : vector<8x32xf32>
    %194 = arith.mulf %189, %193 : vector<8x32xf32>
    %195 = arith.index_cast %173 : i32 to index
    %c0_51 = arith.constant 0 : index
    %196 = vector.load %arg11[%195, %c0_51] : memref<64x32xf32, #tpu.memory_space<vmem>>, vector<8x32xf32>
    tpu.vector_store %arg11[%195, %c0_51], %194 {strides = array<i32>} : memref<64x32xf32, #tpu.memory_space<vmem>>, vector<8x32xf32>,
    %c7_i32 = arith.constant 7 : i32
    %c8_i32_52 = arith.constant 8 : i32
    %197 = arith.muli %c7_i32, %c8_i32_52 : i32
    %198 = tpu.assume_multiple %197, 8 : i32
    %199 = arith.index_cast %198 : i32 to index
    %c0_53 = arith.constant 0 : index
    %200 = vector.load %arg12[%199, %c0_53] : memref<64x128xf32, #tpu.memory_space<vmem>>, vector<8x128xf32>
    %201 = arith.truncf %194 : vector<8x32xf32> to vector<8x32xbf16>
    %cst_54 = arith.constant dense<0.000000e+00> : vector<8x128xf32>
    %202 = tpu.matmul %201, %17, %cst_54 {dimension_numbers = #tpu.dot_dimension_numbers<[1], [0], [0], [1], [0, 0, 1, 1], [], []>} : vector<8x32xbf16>, vector<32x128xbf16>, vector<8x128xf32> -> vector<8x128xf32>
    %203 = arith.addf %200, %202 : vector<8x128xf32>
    %204 = math.tanh %203 : vector<8x128xf32>
    %205 = arith.negf %203 : vector<8x128xf32>
    %206 = math.exp %205 : vector<8x128xf32>
    %cst_55 = arith.constant 1.000000e+00 : f32
    %207 = vector.broadcast %cst_55 : f32 to vector<8x128xf32>
    %208 = arith.addf %207, %206 : vector<8x128xf32>
    %209 = arith.divf %207, %208 : vector<8x128xf32>
    %210 = arith.select %5, %204, %209 : vector<8x128xi1>, vector<8x128xf32>
    %211 = vector.extract_strided_slice %210 {offsets = [0, 0], sizes = [8, 32], strides = [1, 1]} : vector<8x128xf32> to vector<8x32xf32>
    %212 = vector.extract_strided_slice %210 {offsets = [0, 32], sizes = [8, 32], strides = [1, 1]} : vector<8x128xf32> to vector<8x32xf32>
    %213 = vector.extract_strided_slice %210 {offsets = [0, 64], sizes = [8, 32], strides = [1, 1]} : vector<8x128xf32> to vector<8x32xf32>
    %214 = vector.extract_strided_slice %210 {offsets = [0, 96], sizes = [8, 32], strides = [1, 1]} : vector<8x128xf32> to vector<8x32xf32>
    %215 = arith.mulf %212, %192 : vector<8x32xf32>
    %216 = arith.mulf %211, %213 : vector<8x32xf32>
    %217 = arith.addf %215, %216 : vector<8x32xf32>
    %218 = math.tanh %217 : vector<8x32xf32>
    %219 = arith.mulf %214, %218 : vector<8x32xf32>
    %220 = arith.index_cast %198 : i32 to index
    %c0_56 = arith.constant 0 : index
    %221 = vector.load %arg11[%220, %c0_56] : memref<64x32xf32, #tpu.memory_space<vmem>>, vector<8x32xf32>
    tpu.vector_store %arg11[%220, %c0_56], %219 {strides = array<i32>} : memref<64x32xf32, #tpu.memory_space<vmem>>, vector<8x32xf32>,
    %c8_i32_57 = arith.constant 8 : i32
    %c0_58 = arith.constant 0 : index
    %c0_59 = arith.constant 0 : index
    %c0_60 = arith.constant 0 : index
    %222 = vector.load %arg9[%c0_58, %c0_59, %c0_60] : memref<2x8x32xf32, #tpu.memory_space<vmem>>, vector<1x8x32xf32>
    %223 = vector.shape_cast %222 : vector<1x8x32xf32> to vector<8x32xf32>
    %224 = vector.shape_cast %219 : vector<8x32xf32> to vector<1x8x32xf32>
    tpu.vector_store %arg9[%c0_58, %c0_59, %c0_60], %224 {strides = array<i32>} : memref<2x8x32xf32, #tpu.memory_space<vmem>>, vector<1x8x32xf32>,
    %c0_61 = arith.constant 0 : index
    %c0_62 = arith.constant 0 : index
    %c0_63 = arith.constant 0 : index
    %225 = vector.load %arg10[%c0_61, %c0_62, %c0_63] : memref<2x8x32xf32, #tpu.memory_space<vmem>>, vector<1x8x32xf32>
    %226 = vector.shape_cast %225 : vector<1x8x32xf32> to vector<8x32xf32>
    %227 = vector.shape_cast %217 : vector<8x32xf32> to vector<1x8x32xf32>
    tpu.vector_store %arg10[%c0_61, %c0_62, %c0_63], %227 {strides = array<i32>} : memref<2x8x32xf32, #tpu.memory_space<vmem>>, vector<1x8x32xf32>,
    %c0_64 = arith.constant 0 : index
    %c0_65 = arith.constant 0 : index
    %228 = vector.load %arg11[%c0_64, %c0_65] : memref<64x32xf32, #tpu.memory_space<vmem>>, vector<64x32xf32>
    %229 = arith.truncf %228 : vector<64x32xf32> to vector<64x32xbf16>
    %c1 = arith.constant 1 : index
    %c0_66 = arith.constant 0 : index
    %c0_67 = arith.constant 0 : index
    %230 = vector.load %arg3[%c1, %c0_66, %c0_67] : memref<2x32x128xbf16, #tpu.memory_space<vmem>>, vector<1x32x128xbf16>
    %231 = vector.shape_cast %230 : vector<1x32x128xbf16> to vector<32x128xbf16>
    %cst_68 = arith.constant dense<0.000000e+00> : vector<64x128xf32>
    %232 = tpu.matmul %229, %231, %cst_68 {dimension_numbers = #tpu.dot_dimension_numbers<[1], [0], [0], [1], [0, 0, 1, 1], [], []>} : vector<64x32xbf16>, vector<32x128xbf16>, vector<64x128xf32> -> vector<64x128xf32>
    %c1_69 = arith.constant 1 : index
    %c0_70 = arith.constant 0 : index
    %c0_71 = arith.constant 0 : index
    %233 = vector.load %arg5[%c1_69, %c0_70, %c0_71] : memref<2x1x128xf32, #tpu.memory_space<vmem>>, vector<1x1x128xf32>
    %234 = vector.shape_cast %233 : vector<1x1x128xf32> to vector<1x128xf32>
    %235 = vector.broadcast %234 : vector<1x128xf32> to vector<64x128xf32>
    %236 = arith.addf %232, %235 : vector<64x128xf32>
    %c0_72 = arith.constant 0 : index
    %c0_73 = arith.constant 0 : index
    %237 = vector.load %arg12[%c0_72, %c0_73] : memref<64x128xf32, #tpu.memory_space<vmem>>, vector<64x128xf32>
    tpu.vector_store %arg12[%c0_72, %c0_73], %236 {strides = array<i32>} : memref<64x128xf32, #tpu.memory_space<vmem>>, vector<64x128xf32>,
    %c1_74 = arith.constant 1 : index
    %c0_75 = arith.constant 0 : index
    %c0_76 = arith.constant 0 : index
    %238 = vector.load %arg4[%c1_74, %c0_75, %c0_76] : memref<2x32x128xbf16, #tpu.memory_space<vmem>>, vector<1x32x128xbf16>
    %239 = vector.shape_cast %238 : vector<1x32x128xbf16> to vector<32x128xbf16>
    %c1_77 = arith.constant 1 : index
    %c0_78 = arith.constant 0 : index
    %c0_79 = arith.constant 0 : index
    %240 = vector.load %arg1[%c1_77, %c0_78, %c0_79] : memref<2x8x32xf32, #tpu.memory_space<vmem>>, vector<1x8x32xf32>
    %241 = vector.shape_cast %240 : vector<1x8x32xf32> to vector<8x32xf32>
    %c1_80 = arith.constant 1 : index
    %c0_81 = arith.constant 0 : index
    %c0_82 = arith.constant 0 : index
    %242 = vector.load %arg2[%c1_80, %c0_81, %c0_82] : memref<2x8x32xf32, #tpu.memory_space<vmem>>, vector<1x8x32xf32>
    %243 = vector.shape_cast %242 : vector<1x8x32xf32> to vector<8x32xf32>
    %c0_i32_83 = arith.constant 0 : i32
    %c8_i32_84 = arith.constant 8 : i32
    %244 = arith.muli %c0_i32_83, %c8_i32_84 : i32
    %245 = tpu.assume_multiple %244, 8 : i32
    %246 = arith.index_cast %245 : i32 to index
    %c0_85 = arith.constant 0 : index
    %247 = vector.load %arg12[%246, %c0_85] : memref<64x128xf32, #tpu.memory_space<vmem>>, vector<8x128xf32>
    %248 = arith.truncf %241 : vector<8x32xf32> to vector<8x32xbf16>
    %cst_86 = arith.constant dense<0.000000e+00> : vector<8x128xf32>
    %249 = tpu.matmul %248, %239, %cst_86 {dimension_numbers = #tpu.dot_dimension_numbers<[1], [0], [0], [1], [0, 0, 1, 1], [], []>} : vector<8x32xbf16>, vector<32x128xbf16>, vector<8x128xf32> -> vector<8x128xf32>
    %250 = arith.addf %247, %249 : vector<8x128xf32>
    %251 = math.tanh %250 : vector<8x128xf32>
    %252 = arith.negf %250 : vector<8x128xf32>
    %253 = math.exp %252 : vector<8x128xf32>
    %cst_87 = arith.constant 1.000000e+00 : f32
    %254 = vector.broadcast %cst_87 : f32 to vector<8x128xf32>
    %255 = arith.addf %254, %253 : vector<8x128xf32>
    %256 = arith.divf %254, %255 : vector<8x128xf32>
    %257 = arith.select %5, %251, %256 : vector<8x128xi1>, vector<8x128xf32>
    %258 = vector.extract_strided_slice %257 {offsets = [0, 0], sizes = [8, 32], strides = [1, 1]} : vector<8x128xf32> to vector<8x32xf32>
    %259 = vector.extract_strided_slice %257 {offsets = [0, 32], sizes = [8, 32], strides = [1, 1]} : vector<8x128xf32> to vector<8x32xf32>
    %260 = vector.extract_strided_slice %257 {offsets = [0, 64], sizes = [8, 32], strides = [1, 1]} : vector<8x128xf32> to vector<8x32xf32>
    %261 = vector.extract_strided_slice %257 {offsets = [0, 96], sizes = [8, 32], strides = [1, 1]} : vector<8x128xf32> to vector<8x32xf32>
    %262 = arith.mulf %259, %243 : vector<8x32xf32>
    %263 = arith.mulf %258, %260 : vector<8x32xf32>
    %264 = arith.addf %262, %263 : vector<8x32xf32>
    %265 = math.tanh %264 : vector<8x32xf32>
    %266 = arith.mulf %261, %265 : vector<8x32xf32>
    %267 = arith.index_cast %245 : i32 to index
    %c0_88 = arith.constant 0 : index
    %268 = vector.load %arg11[%267, %c0_88] : memref<64x32xf32, #tpu.memory_space<vmem>>, vector<8x32xf32>
    tpu.vector_store %arg11[%267, %c0_88], %266 {strides = array<i32>} : memref<64x32xf32, #tpu.memory_space<vmem>>, vector<8x32xf32>,
    %c1_i32_89 = arith.constant 1 : i32
    %c8_i32_90 = arith.constant 8 : i32
    %269 = arith.muli %c1_i32_89, %c8_i32_90 : i32
    %270 = tpu.assume_multiple %269, 8 : i32
    %271 = arith.index_cast %270 : i32 to index
    %c0_91 = arith.constant 0 : index
    %272 = vector.load %arg12[%271, %c0_91] : memref<64x128xf32, #tpu.memory_space<vmem>>, vector<8x128xf32>
    %273 = arith.truncf %266 : vector<8x32xf32> to vector<8x32xbf16>
    %cst_92 = arith.constant dense<0.000000e+00> : vector<8x128xf32>
    %274 = tpu.matmul %273, %239, %cst_92 {dimension_numbers = #tpu.dot_dimension_numbers<[1], [0], [0], [1], [0, 0, 1, 1], [], []>} : vector<8x32xbf16>, vector<32x128xbf16>, vector<8x128xf32> -> vector<8x128xf32>
    %275 = arith.addf %272, %274 : vector<8x128xf32>
    %276 = math.tanh %275 : vector<8x128xf32>
    %277 = arith.negf %275 : vector<8x128xf32>
    %278 = math.exp %277 : vector<8x128xf32>
    %cst_93 = arith.constant 1.000000e+00 : f32
    %279 = vector.broadcast %cst_93 : f32 to vector<8x128xf32>
    %280 = arith.addf %279, %278 : vector<8x128xf32>
    %281 = arith.divf %279, %280 : vector<8x128xf32>
    %282 = arith.select %5, %276, %281 : vector<8x128xi1>, vector<8x128xf32>
    %283 = vector.extract_strided_slice %282 {offsets = [0, 0], sizes = [8, 32], strides = [1, 1]} : vector<8x128xf32> to vector<8x32xf32>
    %284 = vector.extract_strided_slice %282 {offsets = [0, 32], sizes = [8, 32], strides = [1, 1]} : vector<8x128xf32> to vector<8x32xf32>
    %285 = vector.extract_strided_slice %282 {offsets = [0, 64], sizes = [8, 32], strides = [1, 1]} : vector<8x128xf32> to vector<8x32xf32>
    %286 = vector.extract_strided_slice %282 {offsets = [0, 96], sizes = [8, 32], strides = [1, 1]} : vector<8x128xf32> to vector<8x32xf32>
    %287 = arith.mulf %284, %264 : vector<8x32xf32>
    %288 = arith.mulf %283, %285 : vector<8x32xf32>
    %289 = arith.addf %287, %288 : vector<8x32xf32>
    %290 = math.tanh %289 : vector<8x32xf32>
    %291 = arith.mulf %286, %290 : vector<8x32xf32>
    %292 = arith.index_cast %270 : i32 to index
    %c0_94 = arith.constant 0 : index
    %293 = vector.load %arg11[%292, %c0_94] : memref<64x32xf32, #tpu.memory_space<vmem>>, vector<8x32xf32>
    tpu.vector_store %arg11[%292, %c0_94], %291 {strides = array<i32>} : memref<64x32xf32, #tpu.memory_space<vmem>>, vector<8x32xf32>,
    %c2_i32_95 = arith.constant 2 : i32
    %c8_i32_96 = arith.constant 8 : i32
    %294 = arith.muli %c2_i32_95, %c8_i32_96 : i32
    %295 = tpu.assume_multiple %294, 8 : i32
    %296 = arith.index_cast %295 : i32 to index
    %c0_97 = arith.constant 0 : index
    %297 = vector.load %arg12[%296, %c0_97] : memref<64x128xf32, #tpu.memory_space<vmem>>, vector<8x128xf32>
    %298 = arith.truncf %291 : vector<8x32xf32> to vector<8x32xbf16>
    %cst_98 = arith.constant dense<0.000000e+00> : vector<8x128xf32>
    %299 = tpu.matmul %298, %239, %cst_98 {dimension_numbers = #tpu.dot_dimension_numbers<[1], [0], [0], [1], [0, 0, 1, 1], [], []>} : vector<8x32xbf16>, vector<32x128xbf16>, vector<8x128xf32> -> vector<8x128xf32>
    %300 = arith.addf %297, %299 : vector<8x128xf32>
    %301 = math.tanh %300 : vector<8x128xf32>
    %302 = arith.negf %300 : vector<8x128xf32>
    %303 = math.exp %302 : vector<8x128xf32>
    %cst_99 = arith.constant 1.000000e+00 : f32
    %304 = vector.broadcast %cst_99 : f32 to vector<8x128xf32>
    %305 = arith.addf %304, %303 : vector<8x128xf32>
    %306 = arith.divf %304, %305 : vector<8x128xf32>
    %307 = arith.select %5, %301, %306 : vector<8x128xi1>, vector<8x128xf32>
    %308 = vector.extract_strided_slice %307 {offsets = [0, 0], sizes = [8, 32], strides = [1, 1]} : vector<8x128xf32> to vector<8x32xf32>
    %309 = vector.extract_strided_slice %307 {offsets = [0, 32], sizes = [8, 32], strides = [1, 1]} : vector<8x128xf32> to vector<8x32xf32>
    %310 = vector.extract_strided_slice %307 {offsets = [0, 64], sizes = [8, 32], strides = [1, 1]} : vector<8x128xf32> to vector<8x32xf32>
    %311 = vector.extract_strided_slice %307 {offsets = [0, 96], sizes = [8, 32], strides = [1, 1]} : vector<8x128xf32> to vector<8x32xf32>
    %312 = arith.mulf %309, %289 : vector<8x32xf32>
    %313 = arith.mulf %308, %310 : vector<8x32xf32>
    %314 = arith.addf %312, %313 : vector<8x32xf32>
    %315 = math.tanh %314 : vector<8x32xf32>
    %316 = arith.mulf %311, %315 : vector<8x32xf32>
    %317 = arith.index_cast %295 : i32 to index
    %c0_100 = arith.constant 0 : index
    %318 = vector.load %arg11[%317, %c0_100] : memref<64x32xf32, #tpu.memory_space<vmem>>, vector<8x32xf32>
    tpu.vector_store %arg11[%317, %c0_100], %316 {strides = array<i32>} : memref<64x32xf32, #tpu.memory_space<vmem>>, vector<8x32xf32>,
    %c3_i32_101 = arith.constant 3 : i32
    %c8_i32_102 = arith.constant 8 : i32
    %319 = arith.muli %c3_i32_101, %c8_i32_102 : i32
    %320 = tpu.assume_multiple %319, 8 : i32
    %321 = arith.index_cast %320 : i32 to index
    %c0_103 = arith.constant 0 : index
    %322 = vector.load %arg12[%321, %c0_103] : memref<64x128xf32, #tpu.memory_space<vmem>>, vector<8x128xf32>
    %323 = arith.truncf %316 : vector<8x32xf32> to vector<8x32xbf16>
    %cst_104 = arith.constant dense<0.000000e+00> : vector<8x128xf32>
    %324 = tpu.matmul %323, %239, %cst_104 {dimension_numbers = #tpu.dot_dimension_numbers<[1], [0], [0], [1], [0, 0, 1, 1], [], []>} : vector<8x32xbf16>, vector<32x128xbf16>, vector<8x128xf32> -> vector<8x128xf32>
    %325 = arith.addf %322, %324 : vector<8x128xf32>
    %326 = math.tanh %325 : vector<8x128xf32>
    %327 = arith.negf %325 : vector<8x128xf32>
    %328 = math.exp %327 : vector<8x128xf32>
    %cst_105 = arith.constant 1.000000e+00 : f32
    %329 = vector.broadcast %cst_105 : f32 to vector<8x128xf32>
    %330 = arith.addf %329, %328 : vector<8x128xf32>
    %331 = arith.divf %329, %330 : vector<8x128xf32>
    %332 = arith.select %5, %326, %331 : vector<8x128xi1>, vector<8x128xf32>
    %333 = vector.extract_strided_slice %332 {offsets = [0, 0], sizes = [8, 32], strides = [1, 1]} : vector<8x128xf32> to vector<8x32xf32>
    %334 = vector.extract_strided_slice %332 {offsets = [0, 32], sizes = [8, 32], strides = [1, 1]} : vector<8x128xf32> to vector<8x32xf32>
    %335 = vector.extract_strided_slice %332 {offsets = [0, 64], sizes = [8, 32], strides = [1, 1]} : vector<8x128xf32> to vector<8x32xf32>
    %336 = vector.extract_strided_slice %332 {offsets = [0, 96], sizes = [8, 32], strides = [1, 1]} : vector<8x128xf32> to vector<8x32xf32>
    %337 = arith.mulf %334, %314 : vector<8x32xf32>
    %338 = arith.mulf %333, %335 : vector<8x32xf32>
    %339 = arith.addf %337, %338 : vector<8x32xf32>
    %340 = math.tanh %339 : vector<8x32xf32>
    %341 = arith.mulf %336, %340 : vector<8x32xf32>
    %342 = arith.index_cast %320 : i32 to index
    %c0_106 = arith.constant 0 : index
    %343 = vector.load %arg11[%342, %c0_106] : memref<64x32xf32, #tpu.memory_space<vmem>>, vector<8x32xf32>
    tpu.vector_store %arg11[%342, %c0_106], %341 {strides = array<i32>} : memref<64x32xf32, #tpu.memory_space<vmem>>, vector<8x32xf32>,
    %c4_i32_107 = arith.constant 4 : i32
    %c8_i32_108 = arith.constant 8 : i32
    %344 = arith.muli %c4_i32_107, %c8_i32_108 : i32
    %345 = tpu.assume_multiple %344, 8 : i32
    %346 = arith.index_cast %345 : i32 to index
    %c0_109 = arith.constant 0 : index
    %347 = vector.load %arg12[%346, %c0_109] : memref<64x128xf32, #tpu.memory_space<vmem>>, vector<8x128xf32>
    %348 = arith.truncf %341 : vector<8x32xf32> to vector<8x32xbf16>
    %cst_110 = arith.constant dense<0.000000e+00> : vector<8x128xf32>
    %349 = tpu.matmul %348, %239, %cst_110 {dimension_numbers = #tpu.dot_dimension_numbers<[1], [0], [0], [1], [0, 0, 1, 1], [], []>} : vector<8x32xbf16>, vector<32x128xbf16>, vector<8x128xf32> -> vector<8x128xf32>
    %350 = arith.addf %347, %349 : vector<8x128xf32>
    %351 = math.tanh %350 : vector<8x128xf32>
    %352 = arith.negf %350 : vector<8x128xf32>
    %353 = math.exp %352 : vector<8x128xf32>
    %cst_111 = arith.constant 1.000000e+00 : f32
    %354 = vector.broadcast %cst_111 : f32 to vector<8x128xf32>
    %355 = arith.addf %354, %353 : vector<8x128xf32>
    %356 = arith.divf %354, %355 : vector<8x128xf32>
    %357 = arith.select %5, %351, %356 : vector<8x128xi1>, vector<8x128xf32>
    %358 = vector.extract_strided_slice %357 {offsets = [0, 0], sizes = [8, 32], strides = [1, 1]} : vector<8x128xf32> to vector<8x32xf32>
    %359 = vector.extract_strided_slice %357 {offsets = [0, 32], sizes = [8, 32], strides = [1, 1]} : vector<8x128xf32> to vector<8x32xf32>
    %360 = vector.extract_strided_slice %357 {offsets = [0, 64], sizes = [8, 32], strides = [1, 1]} : vector<8x128xf32> to vector<8x32xf32>
    %361 = vector.extract_strided_slice %357 {offsets = [0, 96], sizes = [8, 32], strides = [1, 1]} : vector<8x128xf32> to vector<8x32xf32>
    %362 = arith.mulf %359, %339 : vector<8x32xf32>
    %363 = arith.mulf %358, %360 : vector<8x32xf32>
    %364 = arith.addf %362, %363 : vector<8x32xf32>
    %365 = math.tanh %364 : vector<8x32xf32>
    %366 = arith.mulf %361, %365 : vector<8x32xf32>
    %367 = arith.index_cast %345 : i32 to index
    %c0_112 = arith.constant 0 : index
    %368 = vector.load %arg11[%367, %c0_112] : memref<64x32xf32, #tpu.memory_space<vmem>>, vector<8x32xf32>
    tpu.vector_store %arg11[%367, %c0_112], %366 {strides = array<i32>} : memref<64x32xf32, #tpu.memory_space<vmem>>, vector<8x32xf32>,
    %c5_i32_113 = arith.constant 5 : i32
    %c8_i32_114 = arith.constant 8 : i32
    %369 = arith.muli %c5_i32_113, %c8_i32_114 : i32
    %370 = tpu.assume_multiple %369, 8 : i32
    %371 = arith.index_cast %370 : i32 to index
    %c0_115 = arith.constant 0 : index
    %372 = vector.load %arg12[%371, %c0_115] : memref<64x128xf32, #tpu.memory_space<vmem>>, vector<8x128xf32>
    %373 = arith.truncf %366 : vector<8x32xf32> to vector<8x32xbf16>
    %cst_116 = arith.constant dense<0.000000e+00> : vector<8x128xf32>
    %374 = tpu.matmul %373, %239, %cst_116 {dimension_numbers = #tpu.dot_dimension_numbers<[1], [0], [0], [1], [0, 0, 1, 1], [], []>} : vector<8x32xbf16>, vector<32x128xbf16>, vector<8x128xf32> -> vector<8x128xf32>
    %375 = arith.addf %372, %374 : vector<8x128xf32>
    %376 = math.tanh %375 : vector<8x128xf32>
    %377 = arith.negf %375 : vector<8x128xf32>
    %378 = math.exp %377 : vector<8x128xf32>
    %cst_117 = arith.constant 1.000000e+00 : f32
    %379 = vector.broadcast %cst_117 : f32 to vector<8x128xf32>
    %380 = arith.addf %379, %378 : vector<8x128xf32>
    %381 = arith.divf %379, %380 : vector<8x128xf32>
    %382 = arith.select %5, %376, %381 : vector<8x128xi1>, vector<8x128xf32>
    %383 = vector.extract_strided_slice %382 {offsets = [0, 0], sizes = [8, 32], strides = [1, 1]} : vector<8x128xf32> to vector<8x32xf32>
    %384 = vector.extract_strided_slice %382 {offsets = [0, 32], sizes = [8, 32], strides = [1, 1]} : vector<8x128xf32> to vector<8x32xf32>
    %385 = vector.extract_strided_slice %382 {offsets = [0, 64], sizes = [8, 32], strides = [1, 1]} : vector<8x128xf32> to vector<8x32xf32>
    %386 = vector.extract_strided_slice %382 {offsets = [0, 96], sizes = [8, 32], strides = [1, 1]} : vector<8x128xf32> to vector<8x32xf32>
    %387 = arith.mulf %384, %364 : vector<8x32xf32>
    %388 = arith.mulf %383, %385 : vector<8x32xf32>
    %389 = arith.addf %387, %388 : vector<8x32xf32>
    %390 = math.tanh %389 : vector<8x32xf32>
    %391 = arith.mulf %386, %390 : vector<8x32xf32>
    %392 = arith.index_cast %370 : i32 to index
    %c0_118 = arith.constant 0 : index
    %393 = vector.load %arg11[%392, %c0_118] : memref<64x32xf32, #tpu.memory_space<vmem>>, vector<8x32xf32>
    tpu.vector_store %arg11[%392, %c0_118], %391 {strides = array<i32>} : memref<64x32xf32, #tpu.memory_space<vmem>>, vector<8x32xf32>,
    %c6_i32_119 = arith.constant 6 : i32
    %c8_i32_120 = arith.constant 8 : i32
    %394 = arith.muli %c6_i32_119, %c8_i32_120 : i32
    %395 = tpu.assume_multiple %394, 8 : i32
    %396 = arith.index_cast %395 : i32 to index
    %c0_121 = arith.constant 0 : index
    %397 = vector.load %arg12[%396, %c0_121] : memref<64x128xf32, #tpu.memory_space<vmem>>, vector<8x128xf32>
    %398 = arith.truncf %391 : vector<8x32xf32> to vector<8x32xbf16>
    %cst_122 = arith.constant dense<0.000000e+00> : vector<8x128xf32>
    %399 = tpu.matmul %398, %239, %cst_122 {dimension_numbers = #tpu.dot_dimension_numbers<[1], [0], [0], [1], [0, 0, 1, 1], [], []>} : vector<8x32xbf16>, vector<32x128xbf16>, vector<8x128xf32> -> vector<8x128xf32>
    %400 = arith.addf %397, %399 : vector<8x128xf32>
    %401 = math.tanh %400 : vector<8x128xf32>
    %402 = arith.negf %400 : vector<8x128xf32>
    %403 = math.exp %402 : vector<8x128xf32>
    %cst_123 = arith.constant 1.000000e+00 : f32
    %404 = vector.broadcast %cst_123 : f32 to vector<8x128xf32>
    %405 = arith.addf %404, %403 : vector<8x128xf32>
    %406 = arith.divf %404, %405 : vector<8x128xf32>
    %407 = arith.select %5, %401, %406 : vector<8x128xi1>, vector<8x128xf32>
    %408 = vector.extract_strided_slice %407 {offsets = [0, 0], sizes = [8, 32], strides = [1, 1]} : vector<8x128xf32> to vector<8x32xf32>
    %409 = vector.extract_strided_slice %407 {offsets = [0, 32], sizes = [8, 32], strides = [1, 1]} : vector<8x128xf32> to vector<8x32xf32>
    %410 = vector.extract_strided_slice %407 {offsets = [0, 64], sizes = [8, 32], strides = [1, 1]} : vector<8x128xf32> to vector<8x32xf32>
    %411 = vector.extract_strided_slice %407 {offsets = [0, 96], sizes = [8, 32], strides = [1, 1]} : vector<8x128xf32> to vector<8x32xf32>
    %412 = arith.mulf %409, %389 : vector<8x32xf32>
    %413 = arith.mulf %408, %410 : vector<8x32xf32>
    %414 = arith.addf %412, %413 : vector<8x32xf32>
    %415 = math.tanh %414 : vector<8x32xf32>
    %416 = arith.mulf %411, %415 : vector<8x32xf32>
    %417 = arith.index_cast %395 : i32 to index
    %c0_124 = arith.constant 0 : index
    %418 = vector.load %arg11[%417, %c0_124] : memref<64x32xf32, #tpu.memory_space<vmem>>, vector<8x32xf32>
    tpu.vector_store %arg11[%417, %c0_124], %416 {strides = array<i32>} : memref<64x32xf32, #tpu.memory_space<vmem>>, vector<8x32xf32>,
    %c7_i32_125 = arith.constant 7 : i32
    %c8_i32_126 = arith.constant 8 : i32
    %419 = arith.muli %c7_i32_125, %c8_i32_126 : i32
    %420 = tpu.assume_multiple %419, 8 : i32
    %421 = arith.index_cast %420 : i32 to index
    %c0_127 = arith.constant 0 : index
    %422 = vector.load %arg12[%421, %c0_127] : memref<64x128xf32, #tpu.memory_space<vmem>>, vector<8x128xf32>
    %423 = arith.truncf %416 : vector<8x32xf32> to vector<8x32xbf16>
    %cst_128 = arith.constant dense<0.000000e+00> : vector<8x128xf32>
    %424 = tpu.matmul %423, %239, %cst_128 {dimension_numbers = #tpu.dot_dimension_numbers<[1], [0], [0], [1], [0, 0, 1, 1], [], []>} : vector<8x32xbf16>, vector<32x128xbf16>, vector<8x128xf32> -> vector<8x128xf32>
    %425 = arith.addf %422, %424 : vector<8x128xf32>
    %426 = math.tanh %425 : vector<8x128xf32>
    %427 = arith.negf %425 : vector<8x128xf32>
    %428 = math.exp %427 : vector<8x128xf32>
    %cst_129 = arith.constant 1.000000e+00 : f32
    %429 = vector.broadcast %cst_129 : f32 to vector<8x128xf32>
    %430 = arith.addf %429, %428 : vector<8x128xf32>
    %431 = arith.divf %429, %430 : vector<8x128xf32>
    %432 = arith.select %5, %426, %431 : vector<8x128xi1>, vector<8x128xf32>
    %433 = vector.extract_strided_slice %432 {offsets = [0, 0], sizes = [8, 32], strides = [1, 1]} : vector<8x128xf32> to vector<8x32xf32>
    %434 = vector.extract_strided_slice %432 {offsets = [0, 32], sizes = [8, 32], strides = [1, 1]} : vector<8x128xf32> to vector<8x32xf32>
    %435 = vector.extract_strided_slice %432 {offsets = [0, 64], sizes = [8, 32], strides = [1, 1]} : vector<8x128xf32> to vector<8x32xf32>
    %436 = vector.extract_strided_slice %432 {offsets = [0, 96], sizes = [8, 32], strides = [1, 1]} : vector<8x128xf32> to vector<8x32xf32>
    %437 = arith.mulf %434, %414 : vector<8x32xf32>
    %438 = arith.mulf %433, %435 : vector<8x32xf32>
    %439 = arith.addf %437, %438 : vector<8x32xf32>
    %440 = math.tanh %439 : vector<8x32xf32>
    %441 = arith.mulf %436, %440 : vector<8x32xf32>
    %442 = arith.index_cast %420 : i32 to index
    %c0_130 = arith.constant 0 : index
    %443 = vector.load %arg11[%442, %c0_130] : memref<64x32xf32, #tpu.memory_space<vmem>>, vector<8x32xf32>
    tpu.vector_store %arg11[%442, %c0_130], %441 {strides = array<i32>} : memref<64x32xf32, #tpu.memory_space<vmem>>, vector<8x32xf32>,
    %c8_i32_131 = arith.constant 8 : i32
    %c1_132 = arith.constant 1 : index
    %c0_133 = arith.constant 0 : index
    %c0_134 = arith.constant 0 : index
    %444 = vector.load %arg9[%c1_132, %c0_133, %c0_134] : memref<2x8x32xf32, #tpu.memory_space<vmem>>, vector<1x8x32xf32>
    %445 = vector.shape_cast %444 : vector<1x8x32xf32> to vector<8x32xf32>
    %446 = vector.shape_cast %441 : vector<8x32xf32> to vector<1x8x32xf32>
    tpu.vector_store %arg9[%c1_132, %c0_133, %c0_134], %446 {strides = array<i32>} : memref<2x8x32xf32, #tpu.memory_space<vmem>>, vector<1x8x32xf32>,
    %c1_135 = arith.constant 1 : index
    %c0_136 = arith.constant 0 : index
    %c0_137 = arith.constant 0 : index
    %447 = vector.load %arg10[%c1_135, %c0_136, %c0_137] : memref<2x8x32xf32, #tpu.memory_space<vmem>>, vector<1x8x32xf32>
    %448 = vector.shape_cast %447 : vector<1x8x32xf32> to vector<8x32xf32>
    %449 = vector.shape_cast %439 : vector<8x32xf32> to vector<1x8x32xf32>
    tpu.vector_store %arg10[%c1_135, %c0_136, %c0_137], %449 {strides = array<i32>} : memref<2x8x32xf32, #tpu.memory_space<vmem>>, vector<1x8x32xf32>,
    %450 = arith.truncf %441 : vector<8x32xf32> to vector<8x32xbf16>
    %c0_138 = arith.constant 0 : index
    %c0_139 = arith.constant 0 : index
    %451 = vector.load %arg6[%c0_138, %c0_139] : memref<32x128xbf16, #tpu.memory_space<vmem>>, vector<32x128xbf16>
    %cst_140 = arith.constant dense<0.000000e+00> : vector<8x128xf32>
    %452 = tpu.matmul %450, %451, %cst_140 {dimension_numbers = #tpu.dot_dimension_numbers<[1], [0], [0], [1], [0, 0, 1, 1], [], []>} : vector<8x32xbf16>, vector<32x128xbf16>, vector<8x128xf32> -> vector<8x128xf32>
    %c0_141 = arith.constant 0 : index
    %c0_142 = arith.constant 0 : index
    %453 = vector.load %arg7[%c0_141, %c0_142] : memref<1x128xf32, #tpu.memory_space<vmem>>, vector<1x128xf32>
    %454 = vector.broadcast %453 : vector<1x128xf32> to vector<8x128xf32>
    %455 = arith.addf %452, %454 : vector<8x128xf32>
    %cst_143 = arith.constant dense<0xFF800000> : vector<8xf32>
    %456 = vector.multi_reduction <maximumf>, %455, %cst_143 [1] : vector<8x128xf32> to vector<8xf32>
    %457 = vector.shape_cast %456 : vector<8xf32> to vector<8x1xf32>
    %458 = vector.broadcast %457 : vector<8x1xf32> to vector<8x128xf32>
    %459 = arith.subf %455, %458 : vector<8x128xf32>
    %460 = math.exp %459 : vector<8x128xf32>
    %cst_144 = arith.constant dense<0.000000e+00> : vector<8xf32>
    %461 = vector.multi_reduction <add>, %460, %cst_144 [1] : vector<8x128xf32> to vector<8xf32>
    %462 = vector.shape_cast %461 : vector<8xf32> to vector<8x1xf32>
    %463 = vector.broadcast %462 : vector<8x1xf32> to vector<8x128xf32>
    %464 = arith.divf %460, %463 : vector<8x128xf32>
    %c0_145 = arith.constant 0 : index
    %c0_146 = arith.constant 0 : index
    %465 = vector.load %arg8[%c0_145, %c0_146] : memref<8x128xf32, #tpu.memory_space<vmem>>, vector<8x128xf32>
    tpu.vector_store %arg8[%c0_145, %c0_146], %464 {strides = array<i32>} : memref<8x128xf32, #tpu.memory_space<vmem>>, vector<8x128xf32>,
    return
  }
}

</mosaic_0001>

<llo_original>
// kernel: tpu_custom_call.1
$region0: #{tpu_custom_call.1}
  #allocation0 [shape = 'u32[]', space=smem, size = 0x4, offset = 0x4, fixed_abs, tag = 'smem constant byte address 0x4 - core index']
  #allocation1 [shape = 'u32[72,128]{1,0:T(1,128)}', space=vmem, size = 0x9000, scoped, tag = 'internal scratch']
  #allocation2 [shape = 'f32[64,32]{1,0:T(8,128)}', space=vmem, size = 0x8000, scoped, tag = 'scratch operand']
  #allocation3 [shape = 'f32[64,128]{1,0:T(8,128)}', space=vmem, size = 0x8000, scoped, tag = 'scratch operand']
  %s0 = inlined_call_operand.vmem [shape: f32[64,32], index: 0, kind: input, shape index: {}]
  %s1 = inlined_call_operand.vmem [shape: f32[2,8,32], index: 1, kind: input, shape index: {}]
  %s2 = inlined_call_operand.vmem [shape: f32[2,8,32], index: 2, kind: input, shape index: {}]
  %s3 = inlined_call_operand.vmem [shape: bf16[2,32,128], index: 3, kind: input, shape index: {}]
  %s4 = inlined_call_operand.vmem [shape: bf16[2,32,128], index: 4, kind: input, shape index: {}]
  %s5 = inlined_call_operand.vmem [shape: f32[2,1,128], index: 5, kind: input, shape index: {}]
  %s6 = inlined_call_operand.hbm [shape: bf16[32,128], index: 6, kind: input, shape index: {}]
  %s7 = inlined_call_operand.vmem [shape: f32[1,128], index: 7, kind: input, shape index: {}]
  %s8 = inlined_call_operand.hbm [shape: f32[8,128], index: 8, kind: output, shape index: {0}]
  %s9 = inlined_call_operand.hbm [shape: f32[2,8,32], index: 9, kind: output, shape index: {1}]
  %s10 = inlined_call_operand.hbm [shape: f32[2,8,32], index: 10, kind: output, shape index: {2}]
  %11 = xla_tuple %s8, %s9, %s10
  %s12 = sld [smem:[#allocation0]]
  $region62: #{tpu_custom_call.1} parent=0
    _
  %s14 = ssub.s32 1, %s12
  %s15 = scalar_select 0, %s14, %s12
  $region1: #{tpu_custom_call.1} parent=0
    #allocation4 [shape = 'u8[8192]{0}', space=vmem, size = 0x2000, scoped, tag = 'input window, operand 6, single buffered']
    #allocation5 [shape = 's32[1]{0}', space=sflag, size = 0x4, scoped, tag = 'scoped memory for tpu_custom_call.1']
    #allocation6 [shape = 's32[1]{0}', space=sflag, size = 0x4, scoped, tag = 'scoped memory for tpu_custom_call.1']
    #allocation7 [shape = 'u8[4096]{0}', space=vmem, size = 0x1000, scoped, tag = 'output window, operand 0, single buffered']
    #allocation8 [shape = 'u8[8192]{0}', space=vmem, size = 0x2000, scoped, tag = 'output window, operand 1, single buffered']
    #allocation9 [shape = 's32[1]{0}', space=sflag, size = 0x4, scoped, tag = 'scoped memory for tpu_custom_call.1']
    #allocation10 [shape = 'u8[8192]{0}', space=vmem, size = 0x2000, scoped, tag = 'output window, operand 2, single buffered']
    %16 = vsyncpa [#allocation5], 0
    %17 = vsyncpa [#allocation6], 0
    %18 = vsyncpa [#allocation9], 0
    // Predicated region
    $region2: #{tpu_custom_call.1} parent=1 // pred_check
      _
    $region3: #{tpu_custom_call.1} parent=1 // pred_check_branch
      %20 = sbr.rel (0) target = $region5
    $region4: #{tpu_custom_call.1} parent=1 // pred_region
      _
    $region5: #{tpu_custom_call.1} parent=1 // pred_fallthru
      _
    // Predicated region
    $region6: #{tpu_custom_call.1} parent=1 // pred_check
      _
    $region7: #{tpu_custom_call.1} parent=1 // pred_check_branch
      %22 = sbr.rel (0) target = $region9
    $region8: #{tpu_custom_call.1} parent=1 // pred_region
      _
    $region9: #{tpu_custom_call.1} parent=1 // pred_fallthru
      _
    // Predicated region
    $region10: #{tpu_custom_call.1} parent=1 // pred_check
      _
    $region11: #{tpu_custom_call.1} parent=1 // pred_check_branch
      %24 = sbr.rel (0) target = $region13
    $region12: #{tpu_custom_call.1} parent=1 // pred_region
      _
    $region13: #{tpu_custom_call.1} parent=1 // pred_fallthru
      _
    // Predicated region
    $region14: #{tpu_custom_call.1} parent=1 // pred_check
      _
    $region15: #{tpu_custom_call.1} parent=1 // pred_check_branch
      %26 = sbr.rel (0) target = $region17
    $region16: #{tpu_custom_call.1} parent=1 // pred_region
      _
    $region17: #{tpu_custom_call.1} parent=1 // pred_fallthru
      _
    // Predicated region
    $region18: #{tpu_custom_call.1} parent=1 // pred_check
      _
    $region19: #{tpu_custom_call.1} parent=1 // pred_check_branch
      %28 = sbr.rel (0) target = $region21
    $region20: #{tpu_custom_call.1} parent=1 // pred_region
      _
    $region21: #{tpu_custom_call.1} parent=1 // pred_fallthru
      _
    // Predicated region
    $region22: #{tpu_custom_call.1} parent=1 // pred_check
      _
    $region23: #{tpu_custom_call.1} parent=1 // pred_check_branch
      %30 = sbr.rel (0) target = $region25
    $region24: #{tpu_custom_call.1} parent=1 // pred_region
      _
    $region25: #{tpu_custom_call.1} parent=1 // pred_fallthru
      _
    // Predicated region
    $region26: #{tpu_custom_call.1} parent=1 // pred_check
      _
    $region27: #{tpu_custom_call.1} parent=1 // pred_check_branch
      %32 = sbr.rel (0) target = $region29
    $region28: #{tpu_custom_call.1} parent=1 // pred_region
      %34 = vsyncadd [#allocation5], 0
      %s35 = sshll.u32 %s6, 4
      %s36 = int_to_ptr.hbm [resolvable:$true] %s35
      %s37 = sshll.u32 [#allocation4], 4
      %s38 = int_to_ptr.vmem [resolvable:$true] %s37
      %43 = dma.hbm_to_vmem [thread:$0]  %s36, 256, %s38, [#allocation5], 64, 64, 4
    $region29: #{tpu_custom_call.1} parent=1 // pred_fallthru
      _
    // Predicated region
    $region30: #{tpu_custom_call.1} parent=1 // pred_check
      _
    $region31: #{tpu_custom_call.1} parent=1 // pred_check_branch
      %45 = sbr.rel (0) target = $region33
    $region32: #{tpu_custom_call.1} parent=1 // pred_region
      _
    $region33: #{tpu_custom_call.1} parent=1 // pred_fallthru
      _
    // Predicated region
    $region34: #{tpu_custom_call.1} parent=1 // pred_check
      _
    $region35: #{tpu_custom_call.1} parent=1 // pred_check_branch
      %47 = sbr.rel (0) target = $region37
    $region36: #{tpu_custom_call.1} parent=1 // pred_region
      %49 = dma.done [#allocation5], 256
    $region37: #{tpu_custom_call.1} parent=1 // pred_fallthru
      _
    %v51 = vlaneseq
    %v52 = vand.u32 %v51, 127
    %vm53 = vcmp.ge.s32.totalorder %v52, 64
    %vm54 = vcmp.lt.s32.totalorder %v52, 96
    %vm55 = vmand %vm53, %vm54
    %v56 = vld [vmem:[%s0] sm:$0xff]
    %v57 = vld [vmem:[%s0 + $0x8] sm:$0xff]
    %v58 = vld [vmem:[%s0 + $0x10] sm:$0xff]
    %v59 = vld [vmem:[%s0 + $0x18] sm:$0xff]
    %v60 = vld [vmem:[%s0 + $0x20] sm:$0xff]
    %v61 = vld [vmem:[%s0 + $0x28] sm:$0xff]
    %v62 = vld [vmem:[%s0 + $0x30] sm:$0xff]
    %v63 = vld [vmem:[%s0 + $0x38] sm:$0xff]
    %v64 = vpack.c.bf16 %v57, %v56
    %v65 = vpack.c.bf16 %v59, %v58
    %v66 = vpack.c.bf16 %v61, %v60
    %v67 = vpack.c.bf16 %v63, %v62
    %v68 = vld [vmem:[%s3] sm:$0xf]
    %v69 = vld [vmem:[%s3 + $0x4] sm:$0xf]
    %v70 = vld [vmem:[%s3 + $0x8] sm:$0xf]
    %v71 = vld [vmem:[%s3 + $0xc] sm:$0xf]
    %v72 = vld [vmem:[%s5] sm:$0x1]
    %v74 = vperm.slane %v72, 0
    %v80 = vunpack.c.l.b16 %v68
    %v81 = vunpack.c.l.b16 %v69
    %v82 = vunpack.c.l.b16 %v70
    %v83 = vunpack.c.l.b16 %v71
    %v84 = vpack.c.b16 %v81, %v80
    %v85 = vpack.c.b16 %v83, %v82
    %vm88 = vcmask 261120
    %v90 = vsel %vm88, %v64, 0
    %v93 = vsel %vm88, %v65, 0
    %v96 = vsel %vm88, %v66, 0
    %v99 = vsel %vm88, %v67, 0
    %101 = vmatpush.bf16.msra.mxu0 0
    %102 = vmatpush.bf16.msra.mxu0 0
    %103 = vmatpush.bf16.msra.mxu0 0
    %104 = vmatpush.bf16.msra.mxu0 0
    %105 = vmatpush.bf16.msra.mxu0 0
    %106 = vmatpush.bf16.msra.mxu0 0
    %107 = vmatpush.bf16.msra.mxu0 %v85
    %108 = vmatpush.bf16.msra.mxu0 %v84
    %109 = vmatmul.bf16.gmra.mxu0 %v90
    %v110 = vpop.f32.mrf.mxu0
    %v111 = vadd.f32 %v74, %v110
    %v112 = vpop.f32.mrf.mxu0
    %v113 = vadd.f32 %v74, %v112
    %114 = vmatmul.bf16.gmra.mxu0 %v93
    %v115 = vpop.f32.mrf.mxu0
    %v116 = vadd.f32 %v74, %v115
    %v117 = vpop.f32.mrf.mxu0
    %v118 = vadd.f32 %v74, %v117
    %119 = vmatmul.bf16.gmra.mxu0 %v96
    %v120 = vpop.f32.mrf.mxu0
    %v121 = vadd.f32 %v74, %v120
    %v122 = vpop.f32.mrf.mxu0
    %v123 = vadd.f32 %v74, %v122
    %124 = vmatmul.bf16.gmra.mxu0 %v99
    %v125 = vpop.f32.mrf.mxu0
    %v126 = vadd.f32 %v74, %v125
    %v127 = vpop.f32.mrf.mxu0
    %v128 = vadd.f32 %v74, %v127
    %129 = vdwg.mxu0
    %130 = vst [vmem:[#allocation3] sm:$0xff] %v111
    %131 = vst [vmem:[#allocation3 + $0x8] sm:$0xff] %v113
    %132 = vst [vmem:[#allocation3 + $0x10] sm:$0xff] %v116
    %133 = vst [vmem:[#allocation3 + $0x18] sm:$0xff] %v118
    %134 = vst [vmem:[#allocation3 + $0x20] sm:$0xff] %v121
    %135 = vst [vmem:[#allocation3 + $0x28] sm:$0xff] %v123
    %136 = vst [vmem:[#allocation3 + $0x30] sm:$0xff] %v126
    %137 = vst [vmem:[#allocation3 + $0x38] sm:$0xff] %v128
    %v138 = vld [vmem:[%s4] sm:$0xf]
    %v139 = vld [vmem:[%s4 + $0x4] sm:$0xf]
    %v140 = vld [vmem:[%s4 + $0x8] sm:$0xf]
    %v141 = vld [vmem:[%s4 + $0xc] sm:$0xf]
    %v142 = vld [vmem:[%s1] sm:$0xff]
    %v143 = vld [vmem:[%s2] sm:$0xff]
    %v144 = vld [vmem:[#allocation3] sm:$0xff]
    %v145 = vpack.c.bf16 %v142, %v142
    %v150 = vunpack.c.l.b16 %v138
    %v151 = vunpack.c.l.b16 %v139
    %v152 = vunpack.c.l.b16 %v140
    %v153 = vunpack.c.l.b16 %v141
    %v154 = vpack.c.b16 %v151, %v150
    %v155 = vpack.c.b16 %v153, %v152
    %v159 = vsel %vm88, %v145, 0
    %161 = vmatpush.bf16.msra.mxu0 0
    %162 = vmatpush.bf16.msra.mxu0 0
    %163 = vmatpush.bf16.msra.mxu0 0
    %164 = vmatpush.bf16.msra.mxu0 0
    %165 = vmatpush.bf16.msra.mxu0 0
    %166 = vmatpush.bf16.msra.mxu0 0
    %167 = vmatpush.bf16.msra.mxu0 %v155
    %168 = vmatpush.bf16.msra.mxu0 %v154
    %169 = vmatmul.bf16.gmra.mxu0 %v159
    %v170 = vpop.f32.mrf.mxu0
    %v171 = vadd.f32 0.0, %v170
    %v172 = vpop.f32.mrf.mxu0
    %173 = vdwg.mxu0
    %v174 = vadd.f32 %v144, %v171
    %v175 = vtanh.pop %v174
    %v176 = vxor.u32 %v174, 2147483648
    %v177 = vmul.f32 %v176, 1.442695
    %v178 = vpow.pop %v177
    %v179 = vadd.f32 %v178, 1.0
    %v180 = vrcp.pop %v179
    %v181 = vmul.f32 %v179, %v180
    %v182 = vsub.f32 1.0, %v181
    %v183 = vmul.f32 %v180, %v182
    %v184 = vadd.f32 %v180, %v183
    %vm185 = vweird.f32 %v179
    %vm186 = vweird.f32 %v180
    %vm187 = vmor %vm185, %vm186
    %v188 = vsel %vm187, %v180, %v184
    %v189 = vand.u32 2147483647, %v179
    %vm190 = vcmp.eq.f32.partialorder %v189, 8.507059e+37
    %v191 = vand.u32 %v179, 2147483648
    %v192 = vor.u32 1.1754944e-38, %v191
    %v193 = vsel %vm190, %v192, %v188
    %v194 = vmul.f32 1.0, %v193
    %v195 = vsel %vm55, %v175, %v194
    %197 = vrot.lane.b32.xlu0 %v143, 32
    %v198 = vpop.permute.xlu0 %197
    %v200 = vmul.f32 %v195, %v198
    %202 = vrot.lane.b32.xlu0 %v195, 64
    %v203 = vpop.permute.xlu0 %202
    %v205 = vmul.f32 %v195, %v203
    %207 = vrot.lane.b32.xlu0 %v205, 32
    %v208 = vpop.permute.xlu0 %207
    %v210 = vadd.f32 %v200, %v208
    %v211 = vtanh.pop %v210
    %213 = vrot.lane.b32.xlu0 %v211, 64
    %v214 = vpop.permute.xlu0 %213
    %v216 = vmul.f32 %v195, %v214
    %218 = vrot.lane.b32.xlu0 %v216, 32
    %v219 = vpop.permute.xlu0 %218
    %221 = vst.msk [vmem:[#allocation2] sm:$0xff] %vm88, %v219
    %s222 = scalar_lea.vmem [#allocation3], 8
    %v223 = vld [vmem:[%s222] sm:$0xff]
    %v224 = vpack.c.bf16 %v216, %v216
    %226 = vrot.lane.b32.xlu0 %v224, 32
    %v227 = vpop.permute.xlu0 %226
    %v229 = vsel %vm88, %v227, 0
    %231 = vmatpush.bf16.msra.mxu0 0
    %232 = vmatpush.bf16.msra.mxu0 0
    %233 = vmatpush.bf16.msra.mxu0 0
    %234 = vmatpush.bf16.msra.mxu0 0
    %235 = vmatpush.bf16.msra.mxu0 0
    %236 = vmatpush.bf16.msra.mxu0 0
    %237 = vmatpush.bf16.msra.mxu0 %v155
    %238 = vmatpush.bf16.msra.mxu0 %v154
    %239 = vmatmul.bf16.gmra.mxu0 %v229
    %v240 = vpop.f32.mrf.mxu0
    %v241 = vadd.f32 0.0, %v240
    %v242 = vpop.f32.mrf.mxu0
    %243 = vdwg.mxu0
    %v244 = vadd.f32 %v223, %v241
    %v245 = vtanh.pop %v244
    %v246 = vxor.u32 %v244, 2147483648
    %v247 = vmul.f32 %v246, 1.442695
    %v248 = vpow.pop %v247
    %v249 = vadd.f32 %v248, 1.0
    %v250 = vrcp.pop %v249
    %v251 = vmul.f32 %v249, %v250
    %v252 = vsub.f32 1.0, %v251
    %v253 = vmul.f32 %v250, %v252
    %v254 = vadd.f32 %v250, %v253
    %vm255 = vweird.f32 %v249
    %vm256 = vweird.f32 %v250
    %vm257 = vmor %vm255, %vm256
    %v258 = vsel %vm257, %v250, %v254
    %v259 = vand.u32 2147483647, %v249
    %vm260 = vcmp.eq.f32.partialorder %v259, 8.507059e+37
    %v261 = vand.u32 %v249, 2147483648
    %v262 = vor.u32 1.1754944e-38, %v261
    %v263 = vsel %vm260, %v262, %v258
    %v264 = vmul.f32 1.0, %v263
    %v265 = vsel %vm55, %v245, %v264
    %v266 = vmul.f32 %v265, %v210
    %268 = vrot.lane.b32.xlu0 %v265, 64
    %v269 = vpop.permute.xlu0 %268
    %v271 = vmul.f32 %v265, %v269
    %273 = vrot.lane.b32.xlu0 %v271, 32
    %v274 = vpop.permute.xlu0 %273
    %v276 = vadd.f32 %v266, %v274
    %v277 = vtanh.pop %v276
    %279 = vrot.lane.b32.xlu0 %v277, 64
    %v280 = vpop.permute.xlu0 %279
    %v282 = vmul.f32 %v265, %v280
    %284 = vrot.lane.b32.xlu0 %v282, 32
    %v285 = vpop.permute.xlu0 %284
    %s287 = scalar_lea.vmem [#allocation2], 8
    %288 = vst.msk [vmem:[%s287] sm:$0xff] %vm88, %v285
    %s289 = scalar_lea.vmem [#allocation3], 16
    %v290 = vld [vmem:[%s289] sm:$0xff]
    %v291 = vpack.c.bf16 %v282, %v282
    %293 = vrot.lane.b32.xlu0 %v291, 32
    %v294 = vpop.permute.xlu0 %293
    %v296 = vsel %vm88, %v294, 0
    %298 = vmatpush.bf16.msra.mxu0 0
    %299 = vmatpush.bf16.msra.mxu0 0
    %300 = vmatpush.bf16.msra.mxu0 0
    %301 = vmatpush.bf16.msra.mxu0 0
    %302 = vmatpush.bf16.msra.mxu0 0
    %303 = vmatpush.bf16.msra.mxu0 0
    %304 = vmatpush.bf16.msra.mxu0 %v155
    %305 = vmatpush.bf16.msra.mxu0 %v154
    %306 = vmatmul.bf16.gmra.mxu0 %v296
    %v307 = vpop.f32.mrf.mxu0
    %v308 = vadd.f32 0.0, %v307
    %v309 = vpop.f32.mrf.mxu0
    %310 = vdwg.mxu0
    %v311 = vadd.f32 %v290, %v308
    %v312 = vtanh.pop %v311
    %v313 = vxor.u32 %v311, 2147483648
    %v314 = vmul.f32 %v313, 1.442695
    %v315 = vpow.pop %v314
    %v316 = vadd.f32 %v315, 1.0
    %v317 = vrcp.pop %v316
    %v318 = vmul.f32 %v316, %v317
    %v319 = vsub.f32 1.0, %v318
    %v320 = vmul.f32 %v317, %v319
    %v321 = vadd.f32 %v317, %v320
    %vm322 = vweird.f32 %v316
    %vm323 = vweird.f32 %v317
    %vm324 = vmor %vm322, %vm323
    %v325 = vsel %vm324, %v317, %v321
    %v326 = vand.u32 2147483647, %v316
    %vm327 = vcmp.eq.f32.partialorder %v326, 8.507059e+37
    %v328 = vand.u32 %v316, 2147483648
    %v329 = vor.u32 1.1754944e-38, %v328
    %v330 = vsel %vm327, %v329, %v325
    %v331 = vmul.f32 1.0, %v330
    %v332 = vsel %vm55, %v312, %v331
    %v333 = vmul.f32 %v332, %v276
    %335 = vrot.lane.b32.xlu0 %v332, 64
    %v336 = vpop.permute.xlu0 %335
    %v338 = vmul.f32 %v332, %v336
    %340 = vrot.lane.b32.xlu0 %v338, 32
    %v341 = vpop.permute.xlu0 %340
    %v343 = vadd.f32 %v333, %v341
    %v344 = vtanh.pop %v343
    %346 = vrot.lane.b32.xlu0 %v344, 64
    %v347 = vpop.permute.xlu0 %346
    %v349 = vmul.f32 %v332, %v347
    %351 = vrot.lane.b32.xlu0 %v349, 32
    %v352 = vpop.permute.xlu0 %351
    %s354 = scalar_lea.vmem [#allocation2], 16
    %355 = vst.msk [vmem:[%s354] sm:$0xff] %vm88, %v352
    %s356 = scalar_lea.vmem [#allocation3], 24
    %v357 = vld [vmem:[%s356] sm:$0xff]
    %v358 = vpack.c.bf16 %v349, %v349
    %360 = vrot.lane.b32.xlu0 %v358, 32
    %v361 = vpop.permute.xlu0 %360
    %v363 = vsel %vm88, %v361, 0
    %365 = vmatpush.bf16.msra.mxu0 0
    %366 = vmatpush.bf16.msra.mxu0 0
    %367 = vmatpush.bf16.msra.mxu0 0
    %368 = vmatpush.bf16.msra.mxu0 0
    %369 = vmatpush.bf16.msra.mxu0 0
    %370 = vmatpush.bf16.msra.mxu0 0
    %371 = vmatpush.bf16.msra.mxu0 %v155
    %372 = vmatpush.bf16.msra.mxu0 %v154
    %373 = vmatmul.bf16.gmra.mxu0 %v363
    %v374 = vpop.f32.mrf.mxu0
    %v375 = vadd.f32 0.0, %v374
    %v376 = vpop.f32.mrf.mxu0
    %377 = vdwg.mxu0
    %v378 = vadd.f32 %v357, %v375
    %v379 = vtanh.pop %v378
    %v380 = vxor.u32 %v378, 2147483648
    %v381 = vmul.f32 %v380, 1.442695
    %v382 = vpow.pop %v381
    %v383 = vadd.f32 %v382, 1.0
    %v384 = vrcp.pop %v383
    %v385 = vmul.f32 %v383, %v384
    %v386 = vsub.f32 1.0, %v385
    %v387 = vmul.f32 %v384, %v386
    %v388 = vadd.f32 %v384, %v387
    %vm389 = vweird.f32 %v383
    %vm390 = vweird.f32 %v384
    %vm391 = vmor %vm389, %vm390
    %v392 = vsel %vm391, %v384, %v388
    %v393 = vand.u32 2147483647, %v383
    %vm394 = vcmp.eq.f32.partialorder %v393, 8.507059e+37
    %v395 = vand.u32 %v383, 2147483648
    %v396 = vor.u32 1.1754944e-38, %v395
    %v397 = vsel %vm394, %v396, %v392
    %v398 = vmul.f32 1.0, %v397
    %v399 = vsel %vm55, %v379, %v398
    %v400 = vmul.f32 %v399, %v343
    %402 = vrot.lane.b32.xlu0 %v399, 64
    %v403 = vpop.permute.xlu0 %402
    %v405 = vmul.f32 %v399, %v403
    %407 = vrot.lane.b32.xlu0 %v405, 32
    %v408 = vpop.permute.xlu0 %407
    %v410 = vadd.f32 %v400, %v408
    %v411 = vtanh.pop %v410
    %413 = vrot.lane.b32.xlu0 %v411, 64
    %v414 = vpop.permute.xlu0 %413
    %v416 = vmul.f32 %v399, %v414
    %418 = vrot.lane.b32.xlu0 %v416, 32
    %v419 = vpop.permute.xlu0 %418
    %s421 = scalar_lea.vmem [#allocation2], 24
    %422 = vst.msk [vmem:[%s421] sm:$0xff] %vm88, %v419
    %s423 = scalar_lea.vmem [#allocation3], 32
    %v424 = vld [vmem:[%s423] sm:$0xff]
    %v425 = vpack.c.bf16 %v416, %v416
    %427 = vrot.lane.b32.xlu0 %v425, 32
    %v428 = vpop.permute.xlu0 %427
    %v430 = vsel %vm88, %v428, 0
    %432 = vmatpush.bf16.msra.mxu0 0
    %433 = vmatpush.bf16.msra.mxu0 0
    %434 = vmatpush.bf16.msra.mxu0 0
    %435 = vmatpush.bf16.msra.mxu0 0
    %436 = vmatpush.bf16.msra.mxu0 0
    %437 = vmatpush.bf16.msra.mxu0 0
    %438 = vmatpush.bf16.msra.mxu0 %v155
    %439 = vmatpush.bf16.msra.mxu0 %v154
    %440 = vmatmul.bf16.gmra.mxu0 %v430
    %v441 = vpop.f32.mrf.mxu0
    %v442 = vadd.f32 0.0, %v441
    %v443 = vpop.f32.mrf.mxu0
    %444 = vdwg.mxu0
    %v445 = vadd.f32 %v424, %v442
    %v446 = vtanh.pop %v445
    %v447 = vxor.u32 %v445, 2147483648
    %v448 = vmul.f32 %v447, 1.442695
    %v449 = vpow.pop %v448
    %v450 = vadd.f32 %v449, 1.0
    %v451 = vrcp.pop %v450
    %v452 = vmul.f32 %v450, %v451
    %v453 = vsub.f32 1.0, %v452
    %v454 = vmul.f32 %v451, %v453
    %v455 = vadd.f32 %v451, %v454
    %vm456 = vweird.f32 %v450
    %vm457 = vweird.f32 %v451
    %vm458 = vmor %vm456, %vm457
    %v459 = vsel %vm458, %v451, %v455
    %v460 = vand.u32 2147483647, %v450
    %vm461 = vcmp.eq.f32.partialorder %v460, 8.507059e+37
    %v462 = vand.u32 %v450, 2147483648
    %v463 = vor.u32 1.1754944e-38, %v462
    %v464 = vsel %vm461, %v463, %v459
    %v465 = vmul.f32 1.0, %v464
    %v466 = vsel %vm55, %v446, %v465
    %v467 = vmul.f32 %v466, %v410
    %469 = vrot.lane.b32.xlu0 %v466, 64
    %v470 = vpop.permute.xlu0 %469
    %v472 = vmul.f32 %v466, %v470
    %474 = vrot.lane.b32.xlu0 %v472, 32
    %v475 = vpop.permute.xlu0 %474
    %v477 = vadd.f32 %v467, %v475
    %v478 = vtanh.pop %v477
    %480 = vrot.lane.b32.xlu0 %v478, 64
    %v481 = vpop.permute.xlu0 %480
    %v483 = vmul.f32 %v466, %v481
    %485 = vrot.lane.b32.xlu0 %v483, 32
    %v486 = vpop.permute.xlu0 %485
    %s488 = scalar_lea.vmem [#allocation2], 32
    %489 = vst.msk [vmem:[%s488] sm:$0xff] %vm88, %v486
    %s490 = scalar_lea.vmem [#allocation3], 40
    %v491 = vld [vmem:[%s490] sm:$0xff]
    %v492 = vpack.c.bf16 %v483, %v483
    %494 = vrot.lane.b32.xlu0 %v492, 32
    %v495 = vpop.permute.xlu0 %494
    %v497 = vsel %vm88, %v495, 0
    %499 = vmatpush.bf16.msra.mxu0 0
    %500 = vmatpush.bf16.msra.mxu0 0
    %501 = vmatpush.bf16.msra.mxu0 0
    %502 = vmatpush.bf16.msra.mxu0 0
    %503 = vmatpush.bf16.msra.mxu0 0
    %504 = vmatpush.bf16.msra.mxu0 0
    %505 = vmatpush.bf16.msra.mxu0 %v155
    %506 = vmatpush.bf16.msra.mxu0 %v154
    %507 = vmatmul.bf16.gmra.mxu0 %v497
    %v508 = vpop.f32.mrf.mxu0
    %v509 = vadd.f32 0.0, %v508
    %v510 = vpop.f32.mrf.mxu0
    %511 = vdwg.mxu0
    %v512 = vadd.f32 %v491, %v509
    %v513 = vtanh.pop %v512
    %v514 = vxor.u32 %v512, 2147483648
    %v515 = vmul.f32 %v514, 1.442695
    %v516 = vpow.pop %v515
    %v517 = vadd.f32 %v516, 1.0
    %v518 = vrcp.pop %v517
    %v519 = vmul.f32 %v517, %v518
    %v520 = vsub.f32 1.0, %v519
    %v521 = vmul.f32 %v518, %v520
    %v522 = vadd.f32 %v518, %v521
    %vm523 = vweird.f32 %v517
    %vm524 = vweird.f32 %v518
    %vm525 = vmor %vm523, %vm524
    %v526 = vsel %vm525, %v518, %v522
    %v527 = vand.u32 2147483647, %v517
    %vm528 = vcmp.eq.f32.partialorder %v527, 8.507059e+37
    %v529 = vand.u32 %v517, 2147483648
    %v530 = vor.u32 1.1754944e-38, %v529
    %v531 = vsel %vm528, %v530, %v526
    %v532 = vmul.f32 1.0, %v531
    %v533 = vsel %vm55, %v513, %v532
    %v534 = vmul.f32 %v533, %v477
    %536 = vrot.lane.b32.xlu0 %v533, 64
    %v537 = vpop.permute.xlu0 %536
    %v539 = vmul.f32 %v533, %v537
    %541 = vrot.lane.b32.xlu0 %v539, 32
    %v542 = vpop.permute.xlu0 %541
    %v544 = vadd.f32 %v534, %v542
    %v545 = vtanh.pop %v544
    %547 = vrot.lane.b32.xlu0 %v545, 64
    %v548 = vpop.permute.xlu0 %547
    %v550 = vmul.f32 %v533, %v548
    %552 = vrot.lane.b32.xlu0 %v550, 32
    %v553 = vpop.permute.xlu0 %552
    %s555 = scalar_lea.vmem [#allocation2], 40
    %556 = vst.msk [vmem:[%s555] sm:$0xff] %vm88, %v553
    %s557 = scalar_lea.vmem [#allocation3], 48
    %v558 = vld [vmem:[%s557] sm:$0xff]
    %v559 = vpack.c.bf16 %v550, %v550
    %561 = vrot.lane.b32.xlu0 %v559, 32
    %v562 = vpop.permute.xlu0 %561
    %v564 = vsel %vm88, %v562, 0
    %566 = vmatpush.bf16.msra.mxu0 0
    %567 = vmatpush.bf16.msra.mxu0 0
    %568 = vmatpush.bf16.msra.mxu0 0
    %569 = vmatpush.bf16.msra.mxu0 0
    %570 = vmatpush.bf16.msra.mxu0 0
    %571 = vmatpush.bf16.msra.mxu0 0
    %572 = vmatpush.bf16.msra.mxu0 %v155
    %573 = vmatpush.bf16.msra.mxu0 %v154
    %574 = vmatmul.bf16.gmra.mxu0 %v564
    %v575 = vpop.f32.mrf.mxu0
    %v576 = vadd.f32 0.0, %v575
    %v577 = vpop.f32.mrf.mxu0
    %578 = vdwg.mxu0
    %v579 = vadd.f32 %v558, %v576
    %v580 = vtanh.pop %v579
    %v581 = vxor.u32 %v579, 2147483648
    %v582 = vmul.f32 %v581, 1.442695
    %v583 = vpow.pop %v582
    %v584 = vadd.f32 %v583, 1.0
    %v585 = vrcp.pop %v584
    %v586 = vmul.f32 %v584, %v585
    %v587 = vsub.f32 1.0, %v586
    %v588 = vmul.f32 %v585, %v587
    %v589 = vadd.f32 %v585, %v588
    %vm590 = vweird.f32 %v584
    %vm591 = vweird.f32 %v585
    %vm592 = vmor %vm590, %vm591
    %v593 = vsel %vm592, %v585, %v589
    %v594 = vand.u32 2147483647, %v584
    %vm595 = vcmp.eq.f32.partialorder %v594, 8.507059e+37
    %v596 = vand.u32 %v584, 2147483648
    %v597 = vor.u32 1.1754944e-38, %v596
    %v598 = vsel %vm595, %v597, %v593
    %v599 = vmul.f32 1.0, %v598
    %v600 = vsel %vm55, %v580, %v599
    %v601 = vmul.f32 %v600, %v544
    %603 = vrot.lane.b32.xlu0 %v600, 64
    %v604 = vpop.permute.xlu0 %603
    %v606 = vmul.f32 %v600, %v604
    %608 = vrot.lane.b32.xlu0 %v606, 32
    %v609 = vpop.permute.xlu0 %608
    %v611 = vadd.f32 %v601, %v609
    %v612 = vtanh.pop %v611
    %614 = vrot.lane.b32.xlu0 %v612, 64
    %v615 = vpop.permute.xlu0 %614
    %v617 = vmul.f32 %v600, %v615
    %619 = vrot.lane.b32.xlu0 %v617, 32
    %v620 = vpop.permute.xlu0 %619
    %s622 = scalar_lea.vmem [#allocation2], 48
    %623 = vst.msk [vmem:[%s622] sm:$0xff] %vm88, %v620
    %s624 = scalar_lea.vmem [#allocation3], 56
    %v625 = vld [vmem:[%s624] sm:$0xff]
    %v626 = vpack.c.bf16 %v617, %v617
    %628 = vrot.lane.b32.xlu0 %v626, 32
    %v629 = vpop.permute.xlu0 %628
    %v631 = vsel %vm88, %v629, 0
    %633 = vmatpush.bf16.msra.mxu0 0
    %634 = vmatpush.bf16.msra.mxu0 0
    %635 = vmatpush.bf16.msra.mxu0 0
    %636 = vmatpush.bf16.msra.mxu0 0
    %637 = vmatpush.bf16.msra.mxu0 0
    %638 = vmatpush.bf16.msra.mxu0 0
    %639 = vmatpush.bf16.msra.mxu0 %v155
    %640 = vmatpush.bf16.msra.mxu0 %v154
    %641 = vmatmul.bf16.gmra.mxu0 %v631
    %v642 = vpop.f32.mrf.mxu0
    %v643 = vadd.f32 0.0, %v642
    %v644 = vpop.f32.mrf.mxu0
    %645 = vdwg.mxu0
    %v646 = vadd.f32 %v625, %v643
    %v647 = vtanh.pop %v646
    %v648 = vxor.u32 %v646, 2147483648
    %v649 = vmul.f32 %v648, 1.442695
    %v650 = vpow.pop %v649
    %v651 = vadd.f32 %v650, 1.0
    %v652 = vrcp.pop %v651
    %v653 = vmul.f32 %v651, %v652
    %v654 = vsub.f32 1.0, %v653
    %v655 = vmul.f32 %v652, %v654
    %v656 = vadd.f32 %v652, %v655
    %vm657 = vweird.f32 %v651
    %vm658 = vweird.f32 %v652
    %vm659 = vmor %vm657, %vm658
    %v660 = vsel %vm659, %v652, %v656
    %v661 = vand.u32 2147483647, %v651
    %vm662 = vcmp.eq.f32.partialorder %v661, 8.507059e+37
    %v663 = vand.u32 %v651, 2147483648
    %v664 = vor.u32 1.1754944e-38, %v663
    %v665 = vsel %vm662, %v664, %v660
    %v666 = vmul.f32 1.0, %v665
    %v667 = vsel %vm55, %v647, %v666
    %v668 = vmul.f32 %v667, %v611
    %670 = vrot.lane.b32.xlu0 %v667, 64
    %v671 = vpop.permute.xlu0 %670
    %v673 = vmul.f32 %v667, %v671
    %675 = vrot.lane.b32.xlu0 %v673, 32
    %v676 = vpop.permute.xlu0 %675
    %v678 = vadd.f32 %v668, %v676
    %v679 = vtanh.pop %v678
    %681 = vrot.lane.b32.xlu0 %v679, 64
    %v682 = vpop.permute.xlu0 %681
    %v684 = vmul.f32 %v667, %v682
    %686 = vrot.lane.b32.xlu0 %v684, 32
    %v687 = vpop.permute.xlu0 %686
    %s689 = scalar_lea.vmem [#allocation2], 56
    %690 = vst.msk [vmem:[%s689] sm:$0xff] %vm88, %v687
    %691 = vst.msk [vmem:[#allocation8] sm:$0xff] %vm88, %v687
    %693 = vrot.lane.b32.xlu0 %v678, 96
    %v694 = vpop.permute.xlu0 %693
    %696 = vst.msk [vmem:[#allocation10] sm:$0xff] %vm88, %v694
    %v697 = vld [vmem:[#allocation2] sm:$0xff]
    %v698 = vld [vmem:[#allocation2 + $0x8] sm:$0xff]
    %v699 = vld [vmem:[#allocation2 + $0x10] sm:$0xff]
    %v700 = vld [vmem:[#allocation2 + $0x18] sm:$0xff]
    %v701 = vld [vmem:[#allocation2 + $0x20] sm:$0xff]
    %v702 = vld [vmem:[#allocation2 + $0x28] sm:$0xff]
    %v703 = vld [vmem:[#allocation2 + $0x30] sm:$0xff]
    %v704 = vld [vmem:[#allocation2 + $0x38] sm:$0xff]
    %v705 = vpack.c.bf16 %v698, %v697
    %v706 = vpack.c.bf16 %v700, %v699
    %v707 = vpack.c.bf16 %v702, %v701
    %v708 = vpack.c.bf16 %v704, %v703
    %s709 = scalar_lea.vmem %s3, 16
    %v710 = vld [vmem:[%s709] sm:$0xf]
    %v711 = vld [vmem:[%s709 + $0x4] sm:$0xf]
    %v712 = vld [vmem:[%s709 + $0x8] sm:$0xf]
    %v713 = vld [vmem:[%s709 + $0xc] sm:$0xf]
    %s714 = scalar_lea.vmem %s5, 1
    %v715 = vld [vmem:[%s714] sm:$0x1]
    %v717 = vperm.slane %v715, 0
    %v723 = vunpack.c.l.b16 %v710
    %v724 = vunpack.c.l.b16 %v711
    %v725 = vunpack.c.l.b16 %v712
    %v726 = vunpack.c.l.b16 %v713
    %v727 = vpack.c.b16 %v724, %v723
    %v728 = vpack.c.b16 %v726, %v725
    %v732 = vsel %vm88, %v705, 0
    %v735 = vsel %vm88, %v706, 0
    %v738 = vsel %vm88, %v707, 0
    %v741 = vsel %vm88, %v708, 0
    %743 = vmatpush.bf16.msra.mxu0 0
    %744 = vmatpush.bf16.msra.mxu0 0
    %745 = vmatpush.bf16.msra.mxu0 0
    %746 = vmatpush.bf16.msra.mxu0 0
    %747 = vmatpush.bf16.msra.mxu0 0
    %748 = vmatpush.bf16.msra.mxu0 0
    %749 = vmatpush.bf16.msra.mxu0 %v728
    %750 = vmatpush.bf16.msra.mxu0 %v727
    %751 = vmatmul.bf16.gmra.mxu0 %v732
    %v752 = vpop.f32.mrf.mxu0
    %v753 = vadd.f32 %v717, %v752
    %v754 = vpop.f32.mrf.mxu0
    %v755 = vadd.f32 %v717, %v754
    %756 = vmatmul.bf16.gmra.mxu0 %v735
    %v757 = vpop.f32.mrf.mxu0
    %v758 = vadd.f32 %v717, %v757
    %v759 = vpop.f32.mrf.mxu0
    %v760 = vadd.f32 %v717, %v759
    %761 = vmatmul.bf16.gmra.mxu0 %v738
    %v762 = vpop.f32.mrf.mxu0
    %v763 = vadd.f32 %v717, %v762
    %v764 = vpop.f32.mrf.mxu0
    %v765 = vadd.f32 %v717, %v764
    %766 = vmatmul.bf16.gmra.mxu0 %v741
    %v767 = vpop.f32.mrf.mxu0
    %v768 = vadd.f32 %v717, %v767
    %v769 = vpop.f32.mrf.mxu0
    %v770 = vadd.f32 %v717, %v769
    %771 = vdwg.mxu0
    %772 = vst [vmem:[#allocation3] sm:$0xff] %v753
    %773 = vst [vmem:[#allocation3 + $0x8] sm:$0xff] %v755
    %774 = vst [vmem:[#allocation3 + $0x10] sm:$0xff] %v758
    %775 = vst [vmem:[#allocation3 + $0x18] sm:$0xff] %v760
    %776 = vst [vmem:[#allocation3 + $0x20] sm:$0xff] %v763
    %777 = vst [vmem:[#allocation3 + $0x28] sm:$0xff] %v765
    %778 = vst [vmem:[#allocation3 + $0x30] sm:$0xff] %v768
    %779 = vst [vmem:[#allocation3 + $0x38] sm:$0xff] %v770
    %s780 = scalar_lea.vmem %s4, 16
    %v781 = vld [vmem:[%s780] sm:$0xf]
    %v782 = vld [vmem:[%s780 + $0x4] sm:$0xf]
    %v783 = vld [vmem:[%s780 + $0x8] sm:$0xf]
    %v784 = vld [vmem:[%s780 + $0xc] sm:$0xf]
    %s785 = scalar_lea.vmem %s1, 8
    %v786 = vld [vmem:[%s785] sm:$0xff]
    %s787 = scalar_lea.vmem %s2, 8
    %v788 = vld [vmem:[%s787] sm:$0xff]
    %v789 = vld [vmem:[#allocation3] sm:$0xff]
    %v790 = vpack.c.bf16 %v786, %v786
    %v795 = vunpack.c.l.b16 %v781
    %v796 = vunpack.c.l.b16 %v782
    %v797 = vunpack.c.l.b16 %v783
    %v798 = vunpack.c.l.b16 %v784
    %v799 = vpack.c.b16 %v796, %v795
    %v800 = vpack.c.b16 %v798, %v797
    %v804 = vsel %vm88, %v790, 0
    %806 = vmatpush.bf16.msra.mxu0 0
    %807 = vmatpush.bf16.msra.mxu0 0
    %808 = vmatpush.bf16.msra.mxu0 0
    %809 = vmatpush.bf16.msra.mxu0 0
    %810 = vmatpush.bf16.msra.mxu0 0
    %811 = vmatpush.bf16.msra.mxu0 0
    %812 = vmatpush.bf16.msra.mxu0 %v800
    %813 = vmatpush.bf16.msra.mxu0 %v799
    %814 = vmatmul.bf16.gmra.mxu0 %v804
    %v815 = vpop.f32.mrf.mxu0
    %v816 = vadd.f32 0.0, %v815
    %v817 = vpop.f32.mrf.mxu0
    %818 = vdwg.mxu0
    %v819 = vadd.f32 %v789, %v816
    %v820 = vtanh.pop %v819
    %v821 = vxor.u32 %v819, 2147483648
    %v822 = vmul.f32 %v821, 1.442695
    %v823 = vpow.pop %v822
    %v824 = vadd.f32 %v823, 1.0
    %v825 = vrcp.pop %v824
    %v826 = vmul.f32 %v824, %v825
    %v827 = vsub.f32 1.0, %v826
    %v828 = vmul.f32 %v825, %v827
    %v829 = vadd.f32 %v825, %v828
    %vm830 = vweird.f32 %v824
    %vm831 = vweird.f32 %v825
    %vm832 = vmor %vm830, %vm831
    %v833 = vsel %vm832, %v825, %v829
    %v834 = vand.u32 2147483647, %v824
    %vm835 = vcmp.eq.f32.partialorder %v834, 8.507059e+37
    %v836 = vand.u32 %v824, 2147483648
    %v837 = vor.u32 1.1754944e-38, %v836
    %v838 = vsel %vm835, %v837, %v833
    %v839 = vmul.f32 1.0, %v838
    %v840 = vsel %vm55, %v820, %v839
    %842 = vrot.lane.b32.xlu0 %v788, 32
    %v843 = vpop.permute.xlu0 %842
    %v845 = vmul.f32 %v840, %v843
    %847 = vrot.lane.b32.xlu0 %v840, 64
    %v848 = vpop.permute.xlu0 %847
    %v850 = vmul.f32 %v840, %v848
    %852 = vrot.lane.b32.xlu0 %v850, 32
    %v853 = vpop.permute.xlu0 %852
    %v855 = vadd.f32 %v845, %v853
    %v856 = vtanh.pop %v855
    %858 = vrot.lane.b32.xlu0 %v856, 64
    %v859 = vpop.permute.xlu0 %858
    %v861 = vmul.f32 %v840, %v859
    %863 = vrot.lane.b32.xlu0 %v861, 32
    %v864 = vpop.permute.xlu0 %863
    %866 = vst.msk [vmem:[#allocation2] sm:$0xff] %vm88, %v864
    %v867 = vld [vmem:[%s222] sm:$0xff]
    %v868 = vpack.c.bf16 %v861, %v861
    %870 = vrot.lane.b32.xlu0 %v868, 32
    %v871 = vpop.permute.xlu0 %870
    %v873 = vsel %vm88, %v871, 0
    %875 = vmatpush.bf16.msra.mxu0 0
    %876 = vmatpush.bf16.msra.mxu0 0
    %877 = vmatpush.bf16.msra.mxu0 0
    %878 = vmatpush.bf16.msra.mxu0 0
    %879 = vmatpush.bf16.msra.mxu0 0
    %880 = vmatpush.bf16.msra.mxu0 0
    %881 = vmatpush.bf16.msra.mxu0 %v800
    %882 = vmatpush.bf16.msra.mxu0 %v799
    %883 = vmatmul.bf16.gmra.mxu0 %v873
    %v884 = vpop.f32.mrf.mxu0
    %v885 = vadd.f32 0.0, %v884
    %v886 = vpop.f32.mrf.mxu0
    %887 = vdwg.mxu0
    %v888 = vadd.f32 %v867, %v885
    %v889 = vtanh.pop %v888
    %v890 = vxor.u32 %v888, 2147483648
    %v891 = vmul.f32 %v890, 1.442695
    %v892 = vpow.pop %v891
    %v893 = vadd.f32 %v892, 1.0
    %v894 = vrcp.pop %v893
    %v895 = vmul.f32 %v893, %v894
    %v896 = vsub.f32 1.0, %v895
    %v897 = vmul.f32 %v894, %v896
    %v898 = vadd.f32 %v894, %v897
    %vm899 = vweird.f32 %v893
    %vm900 = vweird.f32 %v894
    %vm901 = vmor %vm899, %vm900
    %v902 = vsel %vm901, %v894, %v898
    %v903 = vand.u32 2147483647, %v893
    %vm904 = vcmp.eq.f32.partialorder %v903, 8.507059e+37
    %v905 = vand.u32 %v893, 2147483648
    %v906 = vor.u32 1.1754944e-38, %v905
    %v907 = vsel %vm904, %v906, %v902
    %v908 = vmul.f32 1.0, %v907
    %v909 = vsel %vm55, %v889, %v908
    %v910 = vmul.f32 %v909, %v855
    %912 = vrot.lane.b32.xlu0 %v909, 64
    %v913 = vpop.permute.xlu0 %912
    %v915 = vmul.f32 %v909, %v913
    %917 = vrot.lane.b32.xlu0 %v915, 32
    %v918 = vpop.permute.xlu0 %917
    %v920 = vadd.f32 %v910, %v918
    %v921 = vtanh.pop %v920
    %923 = vrot.lane.b32.xlu0 %v921, 64
    %v924 = vpop.permute.xlu0 %923
    %v926 = vmul.f32 %v909, %v924
    %928 = vrot.lane.b32.xlu0 %v926, 32
    %v929 = vpop.permute.xlu0 %928
    %931 = vst.msk [vmem:[%s287] sm:$0xff] %vm88, %v929
    %v932 = vld [vmem:[%s289] sm:$0xff]
    %v933 = vpack.c.bf16 %v926, %v926
    %935 = vrot.lane.b32.xlu0 %v933, 32
    %v936 = vpop.permute.xlu0 %935
    %v938 = vsel %vm88, %v936, 0
    %940 = vmatpush.bf16.msra.mxu0 0
    %941 = vmatpush.bf16.msra.mxu0 0
    %942 = vmatpush.bf16.msra.mxu0 0
    %943 = vmatpush.bf16.msra.mxu0 0
    %944 = vmatpush.bf16.msra.mxu0 0
    %945 = vmatpush.bf16.msra.mxu0 0
    %946 = vmatpush.bf16.msra.mxu0 %v800
    %947 = vmatpush.bf16.msra.mxu0 %v799
    %948 = vmatmul.bf16.gmra.mxu0 %v938
    %v949 = vpop.f32.mrf.mxu0
    %v950 = vadd.f32 0.0, %v949
    %v951 = vpop.f32.mrf.mxu0
    %952 = vdwg.mxu0
    %v953 = vadd.f32 %v932, %v950
    %v954 = vtanh.pop %v953
    %v955 = vxor.u32 %v953, 2147483648
    %v956 = vmul.f32 %v955, 1.442695
    %v957 = vpow.pop %v956
    %v958 = vadd.f32 %v957, 1.0
    %v959 = vrcp.pop %v958
    %v960 = vmul.f32 %v958, %v959
    %v961 = vsub.f32 1.0, %v960
    %v962 = vmul.f32 %v959, %v961
    %v963 = vadd.f32 %v959, %v962
    %vm964 = vweird.f32 %v958
    %vm965 = vweird.f32 %v959
    %vm966 = vmor %vm964, %vm965
    %v967 = vsel %vm966, %v959, %v963
    %v968 = vand.u32 2147483647, %v958
    %vm969 = vcmp.eq.f32.partialorder %v968, 8.507059e+37
    %v970 = vand.u32 %v958, 2147483648
    %v971 = vor.u32 1.1754944e-38, %v970
    %v972 = vsel %vm969, %v971, %v967
    %v973 = vmul.f32 1.0, %v972
    %v974 = vsel %vm55, %v954, %v973
    %v975 = vmul.f32 %v974, %v920
    %977 = vrot.lane.b32.xlu0 %v974, 64
    %v978 = vpop.permute.xlu0 %977
    %v980 = vmul.f32 %v974, %v978
    %982 = vrot.lane.b32.xlu0 %v980, 32
    %v983 = vpop.permute.xlu0 %982
    %v985 = vadd.f32 %v975, %v983
    %v986 = vtanh.pop %v985
    %988 = vrot.lane.b32.xlu0 %v986, 64
    %v989 = vpop.permute.xlu0 %988
    %v991 = vmul.f32 %v974, %v989
    %993 = vrot.lane.b32.xlu0 %v991, 32
    %v994 = vpop.permute.xlu0 %993
    %996 = vst.msk [vmem:[%s354] sm:$0xff] %vm88, %v994
    %v997 = vld [vmem:[%s356] sm:$0xff]
    %v998 = vpack.c.bf16 %v991, %v991
    %1000 = vrot.lane.b32.xlu0 %v998, 32
    %v1001 = vpop.permute.xlu0 %1000
    %v1003 = vsel %vm88, %v1001, 0
    %1005 = vmatpush.bf16.msra.mxu0 0
    %1006 = vmatpush.bf16.msra.mxu0 0
    %1007 = vmatpush.bf16.msra.mxu0 0
    %1008 = vmatpush.bf16.msra.mxu0 0
    %1009 = vmatpush.bf16.msra.mxu0 0
    %1010 = vmatpush.bf16.msra.mxu0 0
    %1011 = vmatpush.bf16.msra.mxu0 %v800
    %1012 = vmatpush.bf16.msra.mxu0 %v799
    %1013 = vmatmul.bf16.gmra.mxu0 %v1003
    %v1014 = vpop.f32.mrf.mxu0
    %v1015 = vadd.f32 0.0, %v1014
    %v1016 = vpop.f32.mrf.mxu0
    %1017 = vdwg.mxu0
    %v1018 = vadd.f32 %v997, %v1015
    %v1019 = vtanh.pop %v1018
    %v1020 = vxor.u32 %v1018, 2147483648
    %v1021 = vmul.f32 %v1020, 1.442695
    %v1022 = vpow.pop %v1021
    %v1023 = vadd.f32 %v1022, 1.0
    %v1024 = vrcp.pop %v1023
    %v1025 = vmul.f32 %v1023, %v1024
    %v1026 = vsub.f32 1.0, %v1025
    %v1027 = vmul.f32 %v1024, %v1026
    %v1028 = vadd.f32 %v1024, %v1027
    %vm1029 = vweird.f32 %v1023
    %vm1030 = vweird.f32 %v1024
    %vm1031 = vmor %vm1029, %vm1030
    %v1032 = vsel %vm1031, %v1024, %v1028
    %v1033 = vand.u32 2147483647, %v1023
    %vm1034 = vcmp.eq.f32.partialorder %v1033, 8.507059e+37
    %v1035 = vand.u32 %v1023, 2147483648
    %v1036 = vor.u32 1.1754944e-38, %v1035
    %v1037 = vsel %vm1034, %v1036, %v1032
    %v1038 = vmul.f32 1.0, %v1037
    %v1039 = vsel %vm55, %v1019, %v1038
    %v1040 = vmul.f32 %v1039, %v985
    %1042 = vrot.lane.b32.xlu0 %v1039, 64
    %v1043 = vpop.permute.xlu0 %1042
    %v1045 = vmul.f32 %v1039, %v1043
    %1047 = vrot.lane.b32.xlu0 %v1045, 32
    %v1048 = vpop.permute.xlu0 %1047
    %v1050 = vadd.f32 %v1040, %v1048
    %v1051 = vtanh.pop %v1050
    %1053 = vrot.lane.b32.xlu0 %v1051, 64
    %v1054 = vpop.permute.xlu0 %1053
    %v1056 = vmul.f32 %v1039, %v1054
    %1058 = vrot.lane.b32.xlu0 %v1056, 32
    %v1059 = vpop.permute.xlu0 %1058
    %1061 = vst.msk [vmem:[%s421] sm:$0xff] %vm88, %v1059
    %v1062 = vld [vmem:[%s423] sm:$0xff]
    %v1063 = vpack.c.bf16 %v1056, %v1056
    %1065 = vrot.lane.b32.xlu0 %v1063, 32
    %v1066 = vpop.permute.xlu0 %1065
    %v1068 = vsel %vm88, %v1066, 0
    %1070 = vmatpush.bf16.msra.mxu0 0
    %1071 = vmatpush.bf16.msra.mxu0 0
    %1072 = vmatpush.bf16.msra.mxu0 0
    %1073 = vmatpush.bf16.msra.mxu0 0
    %1074 = vmatpush.bf16.msra.mxu0 0
    %1075 = vmatpush.bf16.msra.mxu0 0
    %1076 = vmatpush.bf16.msra.mxu0 %v800
    %1077 = vmatpush.bf16.msra.mxu0 %v799
    %1078 = vmatmul.bf16.gmra.mxu0 %v1068
    %v1079 = vpop.f32.mrf.mxu0
    %v1080 = vadd.f32 0.0, %v1079
    %v1081 = vpop.f32.mrf.mxu0
    %1082 = vdwg.mxu0
    %v1083 = vadd.f32 %v1062, %v1080
    %v1084 = vtanh.pop %v1083
    %v1085 = vxor.u32 %v1083, 2147483648
    %v1086 = vmul.f32 %v1085, 1.442695
    %v1087 = vpow.pop %v1086
    %v1088 = vadd.f32 %v1087, 1.0
    %v1089 = vrcp.pop %v1088
    %v1090 = vmul.f32 %v1088, %v1089
    %v1091 = vsub.f32 1.0, %v1090
    %v1092 = vmul.f32 %v1089, %v1091
    %v1093 = vadd.f32 %v1089, %v1092
    %vm1094 = vweird.f32 %v1088
    %vm1095 = vweird.f32 %v1089
    %vm1096 = vmor %vm1094, %vm1095
    %v1097 = vsel %vm1096, %v1089, %v1093
    %v1098 = vand.u32 2147483647, %v1088
    %vm1099 = vcmp.eq.f32.partialorder %v1098, 8.507059e+37
    %v1100 = vand.u32 %v1088, 2147483648
    %v1101 = vor.u32 1.1754944e-38, %v1100
    %v1102 = vsel %vm1099, %v1101, %v1097
    %v1103 = vmul.f32 1.0, %v1102
    %v1104 = vsel %vm55, %v1084, %v1103
    %v1105 = vmul.f32 %v1104, %v1050
    %1107 = vrot.lane.b32.xlu0 %v1104, 64
    %v1108 = vpop.permute.xlu0 %1107
    %v1110 = vmul.f32 %v1104, %v1108
    %1112 = vrot.lane.b32.xlu0 %v1110, 32
    %v1113 = vpop.permute.xlu0 %1112
    %v1115 = vadd.f32 %v1105, %v1113
    %v1116 = vtanh.pop %v1115
    %1118 = vrot.lane.b32.xlu0 %v1116, 64
    %v1119 = vpop.permute.xlu0 %1118
    %v1121 = vmul.f32 %v1104, %v1119
    %1123 = vrot.lane.b32.xlu0 %v1121, 32
    %v1124 = vpop.permute.xlu0 %1123
    %1126 = vst.msk [vmem:[%s488] sm:$0xff] %vm88, %v1124
    %v1127 = vld [vmem:[%s490] sm:$0xff]
    %v1128 = vpack.c.bf16 %v1121, %v1121
    %1130 = vrot.lane.b32.xlu0 %v1128, 32
    %v1131 = vpop.permute.xlu0 %1130
    %v1133 = vsel %vm88, %v1131, 0
    %1135 = vmatpush.bf16.msra.mxu0 0
    %1136 = vmatpush.bf16.msra.mxu0 0
    %1137 = vmatpush.bf16.msra.mxu0 0
    %1138 = vmatpush.bf16.msra.mxu0 0
    %1139 = vmatpush.bf16.msra.mxu0 0
    %1140 = vmatpush.bf16.msra.mxu0 0
    %1141 = vmatpush.bf16.msra.mxu0 %v800
    %1142 = vmatpush.bf16.msra.mxu0 %v799
    %1143 = vmatmul.bf16.gmra.mxu0 %v1133
    %v1144 = vpop.f32.mrf.mxu0
    %v1145 = vadd.f32 0.0, %v1144
    %v1146 = vpop.f32.mrf.mxu0
    %1147 = vdwg.mxu0
    %v1148 = vadd.f32 %v1127, %v1145
    %v1149 = vtanh.pop %v1148
    %v1150 = vxor.u32 %v1148, 2147483648
    %v1151 = vmul.f32 %v1150, 1.442695
    %v1152 = vpow.pop %v1151
    %v1153 = vadd.f32 %v1152, 1.0
    %v1154 = vrcp.pop %v1153
    %v1155 = vmul.f32 %v1153, %v1154
    %v1156 = vsub.f32 1.0, %v1155
    %v1157 = vmul.f32 %v1154, %v1156
    %v1158 = vadd.f32 %v1154, %v1157
    %vm1159 = vweird.f32 %v1153
    %vm1160 = vweird.f32 %v1154
    %vm1161 = vmor %vm1159, %vm1160
    %v1162 = vsel %vm1161, %v1154, %v1158
    %v1163 = vand.u32 2147483647, %v1153
    %vm1164 = vcmp.eq.f32.partialorder %v1163, 8.507059e+37
    %v1165 = vand.u32 %v1153, 2147483648
    %v1166 = vor.u32 1.1754944e-38, %v1165
    %v1167 = vsel %vm1164, %v1166, %v1162
    %v1168 = vmul.f32 1.0, %v1167
    %v1169 = vsel %vm55, %v1149, %v1168
    %v1170 = vmul.f32 %v1169, %v1115
    %1172 = vrot.lane.b32.xlu0 %v1169, 64
    %v1173 = vpop.permute.xlu0 %1172
    %v1175 = vmul.f32 %v1169, %v1173
    %1177 = vrot.lane.b32.xlu0 %v1175, 32
    %v1178 = vpop.permute.xlu0 %1177
    %v1180 = vadd.f32 %v1170, %v1178
    %v1181 = vtanh.pop %v1180
    %1183 = vrot.lane.b32.xlu0 %v1181, 64
    %v1184 = vpop.permute.xlu0 %1183
    %v1186 = vmul.f32 %v1169, %v1184
    %1188 = vrot.lane.b32.xlu0 %v1186, 32
    %v1189 = vpop.permute.xlu0 %1188
    %1191 = vst.msk [vmem:[%s555] sm:$0xff] %vm88, %v1189
    %v1192 = vld [vmem:[%s557] sm:$0xff]
    %v1193 = vpack.c.bf16 %v1186, %v1186
    %1195 = vrot.lane.b32.xlu0 %v1193, 32
    %v1196 = vpop.permute.xlu0 %1195
    %v1198 = vsel %vm88, %v1196, 0
    %1200 = vmatpush.bf16.msra.mxu0 0
    %1201 = vmatpush.bf16.msra.mxu0 0
    %1202 = vmatpush.bf16.msra.mxu0 0
    %1203 = vmatpush.bf16.msra.mxu0 0
    %1204 = vmatpush.bf16.msra.mxu0 0
    %1205 = vmatpush.bf16.msra.mxu0 0
    %1206 = vmatpush.bf16.msra.mxu0 %v800
    %1207 = vmatpush.bf16.msra.mxu0 %v799
    %1208 = vmatmul.bf16.gmra.mxu0 %v1198
    %v1209 = vpop.f32.mrf.mxu0
    %v1210 = vadd.f32 0.0, %v1209
    %v1211 = vpop.f32.mrf.mxu0
    %1212 = vdwg.mxu0
    %v1213 = vadd.f32 %v1192, %v1210
    %v1214 = vtanh.pop %v1213
    %v1215 = vxor.u32 %v1213, 2147483648
    %v1216 = vmul.f32 %v1215, 1.442695
    %v1217 = vpow.pop %v1216
    %v1218 = vadd.f32 %v1217, 1.0
    %v1219 = vrcp.pop %v1218
    %v1220 = vmul.f32 %v1218, %v1219
    %v1221 = vsub.f32 1.0, %v1220
    %v1222 = vmul.f32 %v1219, %v1221
    %v1223 = vadd.f32 %v1219, %v1222
    %vm1224 = vweird.f32 %v1218
    %vm1225 = vweird.f32 %v1219
    %vm1226 = vmor %vm1224, %vm1225
    %v1227 = vsel %vm1226, %v1219, %v1223
    %v1228 = vand.u32 2147483647, %v1218
    %vm1229 = vcmp.eq.f32.partialorder %v1228, 8.507059e+37
    %v1230 = vand.u32 %v1218, 2147483648
    %v1231 = vor.u32 1.1754944e-38, %v1230
    %v1232 = vsel %vm1229, %v1231, %v1227
    %v1233 = vmul.f32 1.0, %v1232
    %v1234 = vsel %vm55, %v1214, %v1233
    %v1235 = vmul.f32 %v1234, %v1180
    %1237 = vrot.lane.b32.xlu0 %v1234, 64
    %v1238 = vpop.permute.xlu0 %1237
    %v1240 = vmul.f32 %v1234, %v1238
    %1242 = vrot.lane.b32.xlu0 %v1240, 32
    %v1243 = vpop.permute.xlu0 %1242
    %v1245 = vadd.f32 %v1235, %v1243
    %v1246 = vtanh.pop %v1245
    %1248 = vrot.lane.b32.xlu0 %v1246, 64
    %v1249 = vpop.permute.xlu0 %1248
    %v1251 = vmul.f32 %v1234, %v1249
    %1253 = vrot.lane.b32.xlu0 %v1251, 32
    %v1254 = vpop.permute.xlu0 %1253
    %1256 = vst.msk [vmem:[%s622] sm:$0xff] %vm88, %v1254
    %v1257 = vld [vmem:[%s624] sm:$0xff]
    %v1258 = vpack.c.bf16 %v1251, %v1251
    %1260 = vrot.lane.b32.xlu0 %v1258, 32
    %v1261 = vpop.permute.xlu0 %1260
    %v1263 = vsel %vm88, %v1261, 0
    %1265 = vmatpush.bf16.msra.mxu0 0
    %1266 = vmatpush.bf16.msra.mxu0 0
    %1267 = vmatpush.bf16.msra.mxu0 0
    %1268 = vmatpush.bf16.msra.mxu0 0
    %1269 = vmatpush.bf16.msra.mxu0 0
    %1270 = vmatpush.bf16.msra.mxu0 0
    %1271 = vmatpush.bf16.msra.mxu0 %v800
    %1272 = vmatpush.bf16.msra.mxu0 %v799
    %1273 = vmatmul.bf16.gmra.mxu0 %v1263
    %v1274 = vpop.f32.mrf.mxu0
    %v1275 = vadd.f32 0.0, %v1274
    %v1276 = vpop.f32.mrf.mxu0
    %1277 = vdwg.mxu0
    %v1278 = vadd.f32 %v1257, %v1275
    %v1279 = vtanh.pop %v1278
    %v1280 = vxor.u32 %v1278, 2147483648
    %v1281 = vmul.f32 %v1280, 1.442695
    %v1282 = vpow.pop %v1281
    %v1283 = vadd.f32 %v1282, 1.0
    %v1284 = vrcp.pop %v1283
    %v1285 = vmul.f32 %v1283, %v1284
    %v1286 = vsub.f32 1.0, %v1285
    %v1287 = vmul.f32 %v1284, %v1286
    %v1288 = vadd.f32 %v1284, %v1287
    %vm1289 = vweird.f32 %v1283
    %vm1290 = vweird.f32 %v1284
    %vm1291 = vmor %vm1289, %vm1290
    %v1292 = vsel %vm1291, %v1284, %v1288
    %v1293 = vand.u32 2147483647, %v1283
    %vm1294 = vcmp.eq.f32.partialorder %v1293, 8.507059e+37
    %v1295 = vand.u32 %v1283, 2147483648
    %v1296 = vor.u32 1.1754944e-38, %v1295
    %v1297 = vsel %vm1294, %v1296, %v1292
    %v1298 = vmul.f32 1.0, %v1297
    %v1299 = vsel %vm55, %v1279, %v1298
    %v1300 = vmul.f32 %v1299, %v1245
    %1302 = vrot.lane.b32.xlu0 %v1299, 64
    %v1303 = vpop.permute.xlu0 %1302
    %v1305 = vmul.f32 %v1299, %v1303
    %1307 = vrot.lane.b32.xlu0 %v1305, 32
    %v1308 = vpop.permute.xlu0 %1307
    %v1310 = vadd.f32 %v1300, %v1308
    %v1311 = vtanh.pop %v1310
    %1313 = vrot.lane.b32.xlu0 %v1311, 64
    %v1314 = vpop.permute.xlu0 %1313
    %v1316 = vmul.f32 %v1299, %v1314
    %1318 = vrot.lane.b32.xlu0 %v1316, 32
    %v1319 = vpop.permute.xlu0 %1318
    %1321 = vst.msk [vmem:[%s689] sm:$0xff] %vm88, %v1319
    %s1322 = scalar_lea.vmem [#allocation8], 8
    %1323 = vst.msk [vmem:[%s1322] sm:$0xff] %vm88, %v1319
    %1325 = vrot.lane.b32.xlu0 %v1310, 96
    %v1326 = vpop.permute.xlu0 %1325
    %s1328 = scalar_lea.vmem [#allocation10], 8
    %1329 = vst.msk [vmem:[%s1328] sm:$0xff] %vm88, %v1326
    %v1330 = vpack.c.bf16 %v1316, %v1316
    %v1331 = vld [vmem:[#allocation4] sm:$0xf]
    %v1332 = vld [vmem:[#allocation4 + $0x4] sm:$0xf]
    %v1333 = vld [vmem:[#allocation4 + $0x8] sm:$0xf]
    %v1334 = vld [vmem:[#allocation4 + $0xc] sm:$0xf]
    %v1335 = vld [vmem:[%s7] sm:$0x1]
    %v1337 = vperm.slane %v1335, 0
    %1340 = vrot.lane.b32.xlu0 %v1330, 32
    %v1341 = vpop.permute.xlu0 %1340
    %v1346 = vunpack.c.l.b16 %v1331
    %v1347 = vunpack.c.l.b16 %v1332
    %v1348 = vunpack.c.l.b16 %v1333
    %v1349 = vunpack.c.l.b16 %v1334
    %v1350 = vpack.c.b16 %v1347, %v1346
    %v1351 = vpack.c.b16 %v1349, %v1348
    %v1355 = vsel %vm88, %v1341, 0
    %1357 = vmatpush.bf16.msra.mxu0 0
    %1358 = vmatpush.bf16.msra.mxu0 0
    %1359 = vmatpush.bf16.msra.mxu0 0
    %1360 = vmatpush.bf16.msra.mxu0 0
    %1361 = vmatpush.bf16.msra.mxu0 0
    %1362 = vmatpush.bf16.msra.mxu0 0
    %1363 = vmatpush.bf16.msra.mxu0 %v1351
    %1364 = vmatpush.bf16.msra.mxu0 %v1350
    %1365 = vmatmul.bf16.gmra.mxu0 %v1355
    %v1366 = vpop.f32.mrf.mxu0
    %v1367 = vadd.f32 %v1337, %v1366
    %v1368 = vpop.f32.mrf.mxu0
    %1369 = vdwg.mxu0
    %1370 = vmax.xlane.f32.xlu0 %v1367
    %v1371 = vpop.xlane.xlu0 %1370
    %v1372 = vsub.f32 %v1367, %v1371
    %v1373 = vmul.f32 %v1372, 1.442695
    %v1374 = vpow.pop %v1373
    %1375 = vadd.xlane.f32.xlu0 %v1374
    %v1376 = vpop.xlane.xlu0 %1375
    %v1377 = vrcp.pop %v1376
    %v1378 = vmul.f32 %v1376, %v1377
    %v1379 = vsub.f32 1.0, %v1378
    %v1380 = vmul.f32 %v1377, %v1379
    %v1381 = vadd.f32 %v1377, %v1380
    %vm1382 = vweird.f32 %v1376
    %vm1383 = vweird.f32 %v1377
    %vm1384 = vmor %vm1382, %vm1383
    %v1385 = vsel %vm1384, %v1377, %v1381
    %v1386 = vand.u32 2147483647, %v1376
    %vm1387 = vcmp.eq.f32.partialorder %v1386, 8.507059e+37
    %v1388 = vand.u32 %v1376, 2147483648
    %v1389 = vor.u32 1.1754944e-38, %v1388
    %v1390 = vsel %vm1387, %v1389, %v1385
    %v1391 = vmul.f32 %v1374, %v1390
    %1392 = vst [vmem:[#allocation7] sm:$0xff] %v1391
    // Predicated region
    $region38: #{tpu_custom_call.1} parent=1 // pred_check
      _
    $region39: #{tpu_custom_call.1} parent=1 // pred_check_branch
      %1394 = sbr.rel (0) target = $region41
    $region40: #{tpu_custom_call.1} parent=1 // pred_region
      %1396 = vsyncadd [#allocation6], 0
      %s1398 = sshll.u32 [#allocation7], 4
      %s1399 = int_to_ptr.vmem [resolvable:$true] %s1398
      %s1400 = sshll.u32 %s8, 4
      %s1401 = int_to_ptr.hbm [resolvable:$true] %s1400
      %1403 = dma.vmem_to_hbm [thread:$0]  %s1399, 128, %s1401, [#allocation6]
    $region41: #{tpu_custom_call.1} parent=1 // pred_fallthru
      _
    // Predicated region
    $region42: #{tpu_custom_call.1} parent=1 // pred_check
      _
    $region43: #{tpu_custom_call.1} parent=1 // pred_check_branch
      %1405 = sbr.rel (0) target = $region45
    $region44: #{tpu_custom_call.1} parent=1 // pred_region
      %1407 = vsyncadd [#allocation9], 0
      %s1408 = sshll.u32 [#allocation8], 4
      %s1409 = int_to_ptr.vmem [resolvable:$true] %s1408
      %s1410 = sshll.u32 %s9, 4
      %s1411 = int_to_ptr.hbm [resolvable:$true] %s1410
      %1416 = dma.vmem_to_hbm [thread:$0]  %s1409, 256, %s1411, [#allocation9], 128, 128, 8
    $region45: #{tpu_custom_call.1} parent=1 // pred_fallthru
      _
    // Predicated region
    $region46: #{tpu_custom_call.1} parent=1 // pred_check
      _
    $region47: #{tpu_custom_call.1} parent=1 // pred_check_branch
      %1418 = sbr.rel (0) target = $region49
    $region48: #{tpu_custom_call.1} parent=1 // pred_region
      %1420 = vsyncadd [#allocation9], 0
      %s1421 = sshll.u32 [#allocation10], 4
      %s1422 = int_to_ptr.vmem [resolvable:$true] %s1421
      %s1423 = sshll.u32 %s10, 4
      %s1424 = int_to_ptr.hbm [resolvable:$true] %s1423
      %1429 = dma.vmem_to_hbm [thread:$0]  %s1422, 256, %s1424, [#allocation9], 128, 128, 8
    $region49: #{tpu_custom_call.1} parent=1 // pred_fallthru
      _
    // Predicated region
    $region50: #{tpu_custom_call.1} parent=1 // pred_check
      _
    $region51: #{tpu_custom_call.1} parent=1 // pred_check_branch
      %1431 = sbr.rel (0) target = $region53
    $region52: #{tpu_custom_call.1} parent=1 // pred_region
      %1433 = dma.done [#allocation6], 128
    $region53: #{tpu_custom_call.1} parent=1 // pred_fallthru
      _
    // Predicated region
    $region54: #{tpu_custom_call.1} parent=1 // pred_check
      _
    $region55: #{tpu_custom_call.1} parent=1 // pred_check_branch
      %1435 = sbr.rel (0) target = $region57
    $region56: #{tpu_custom_call.1} parent=1 // pred_region
      %1437 = dma.done [#allocation9], 256
    $region57: #{tpu_custom_call.1} parent=1 // pred_fallthru
      _
    // Predicated region
    $region58: #{tpu_custom_call.1} parent=1 // pred_check
      _
    $region59: #{tpu_custom_call.1} parent=1 // pred_check_branch
      %1439 = sbr.rel (0) target = $region61
    $region60: #{tpu_custom_call.1} parent=1 // pred_region
      %1441 = dma.done [#allocation9], 256
    $region61: #{tpu_custom_call.1} parent=1 // pred_fallthru
      _
    %1442 = vsyncpa [#allocation5], 1
    %1443 = vsyncpa [#allocation6], 1
    %1444 = vsyncpa [#allocation9], 1

</llo_original>
